<compile_context>
chip_gen: v7x
topology: tpu7x:2x2x1
jax: 0.10.0
libtpu: 0.0.40
codegen_flags: <defaults>
</compile_context>

<pallas_src>
import functools
import math

import jax
import jax.numpy as jnp
from jax.experimental import pallas as pl
from jax.experimental.pallas import tpu as pltpu

MIB = 1024 * 1024
# Keep the scoped-VMEM request <= 48 MiB so the same plan runs on v7x
# (64 MiB physical per TensorCore) as well as v5e/v6e (128 MiB physical).
_VMEM_CAP = 48 * MIB
_RESIDENT_BUDGET = 40 * MIB


def _round_up(n, m):
    return ((n + m - 1) // m) * m


def _pad2(a, rows, cols):
    return jnp.pad(a, ((0, rows - a.shape[0]), (0, cols - a.shape[1])))


# --------------------------------------------------------------------------
# Kernel 1: support = x @ W   (dense feature transform, K-tiled over features)
# --------------------------------------------------------------------------
def _xw_kernel(x_ref, w_ref, out_ref, acc_ref):
    k = pl.program_id(1)

    @pl.when(k == 0)
    def _():
        acc_ref[...] = jnp.zeros_like(acc_ref)

    acc_ref[...] += jnp.dot(
        x_ref[...], w_ref[...], preferred_element_type=jnp.float32
    )

    @pl.when(k == pl.num_programs(1) - 1)
    def _():
        out_ref[...] = acc_ref[...].astype(out_ref.dtype)


def _matmul_xw(x, w, *, tm, tk):
    """x: (Np, Kp) bf16, w: (Kp, Hp) bf16 -> (Np, Hp) bf16."""
    Np, Kp = x.shape
    Hp = w.shape[1]
    flops = 2 * Np * Kp * Hp
    bytes_accessed = x.size * 2 + (Np // tm) * w.size * 2 + Np * Hp * 2
    return pl.pallas_call(
        _xw_kernel,
        out_shape=jax.ShapeDtypeStruct((Np, Hp), jnp.bfloat16),
        grid_spec=pltpu.PrefetchScalarGridSpec(
            num_scalar_prefetch=0,
            grid=(Np // tm, Kp // tk),                 # feature reduction last
            in_specs=[
                pl.BlockSpec((tm, tk), lambda i, k: (i, k)),
                pl.BlockSpec((tk, Hp), lambda i, k: (k, 0)),
            ],
            out_specs=pl.BlockSpec((tm, Hp), lambda i, k: (i, 0)),
            scratch_shapes=[pltpu.VMEM((tm, Hp), jnp.float32)],
        ),
        compiler_params=pltpu.CompilerParams(
            dimension_semantics=("parallel", "arbitrary"),
            vmem_limit_bytes=_VMEM_CAP,
        ),
        cost_estimate=pl.CostEstimate(
            flops=flops, transcendentals=0, bytes_accessed=bytes_accessed
        ),
    )(x, w)


# --------------------------------------------------------------------------
# Kernel 2a (fast path): out = act(adj_rowstripe @ support + b)
#   support is fully VMEM-resident; grid is row stripes only (no k axis).
# --------------------------------------------------------------------------
def _spmm_resident_kernel(adj_ref, s_ref, b_ref, out_ref, *, relu, n_valid, tm):
    i = pl.program_id(0)
    r = jnp.dot(adj_ref[...], s_ref[...], preferred_element_type=jnp.float32)
    # Mask the bias so padded (all-zero) adjacency rows stay exactly zero.
    row = i * tm + jax.lax.broadcasted_iota(jnp.int32, (r.shape[0], 1), 0)
    r = r + jnp.where(row < n_valid, b_ref[...], 0.0)
    if relu:
        r = jnp.maximum(r, 0.0)
    out_ref[...] = r.astype(out_ref.dtype)


# --------------------------------------------------------------------------
# Kernel 2b (fallback for very large graphs): k-tiled accumulator SpMM,
#   bias folded into the accumulator init.
# --------------------------------------------------------------------------
def _spmm_ktiled_kernel(adj_ref, s_ref, b_ref, out_ref, acc_ref, *, relu,
                        n_valid, tm):
    i = pl.program_id(0)
    k = pl.program_id(1)

    @pl.when(k == 0)
    def _():
        row = i * tm + jax.lax.broadcasted_iota(jnp.int32, (acc_ref.shape[0], 1), 0)
        acc_ref[...] = jnp.where(row < n_valid, b_ref[...], 0.0)

    acc_ref[...] += jnp.dot(
        adj_ref[...], s_ref[...], preferred_element_type=jnp.float32
    )

    @pl.when(k == pl.num_programs(1) - 1)
    def _():
        r = acc_ref[...]
        if relu:
            r = jnp.maximum(r, 0.0)
        out_ref[...] = r.astype(out_ref.dtype)


def _spmm(adj_p, support, bias, *, relu, out_dtype, n_valid, plan):
    """adj_p: (Np, Np) bf16, support: (Np, Hp) bf16, bias: (1, Hp) f32."""
    Np = adj_p.shape[0]
    Hp = support.shape[1]
    tm = plan["tm"]
    out_itemsize = jnp.dtype(out_dtype).itemsize
    flops = 2 * Np * Np * Hp

    if plan["spmm_resident"]:
        kernel = functools.partial(
            _spmm_resident_kernel, relu=relu, n_valid=n_valid, tm=tm)
        bytes_accessed = (adj_p.size * 2 + support.size * 2 + bias.size * 4
                          + Np * Hp * out_itemsize)
        return pl.pallas_call(
            kernel,
            out_shape=jax.ShapeDtypeStruct((Np, Hp), out_dtype),
            grid_spec=pltpu.PrefetchScalarGridSpec(
                num_scalar_prefetch=0,
                grid=(Np // tm,),
                in_specs=[
                    pl.BlockSpec((tm, Np), lambda i: (i, 0)),   # adj row stripe
                    pl.BlockSpec((Np, Hp), lambda i: (0, 0)),   # support resident
                    pl.BlockSpec((1, Hp), lambda i: (0, 0)),    # bias resident
                ],
                out_specs=pl.BlockSpec((tm, Hp), lambda i: (i, 0)),
            ),
            compiler_params=pltpu.CompilerParams(
                dimension_semantics=("parallel",),
                vmem_limit_bytes=_VMEM_CAP,
            ),
            cost_estimate=pl.CostEstimate(
                flops=flops, transcendentals=0, bytes_accessed=bytes_accessed),
        )(adj_p, support, bias)

    # Fallback: k-tiled accumulator SpMM for graphs too large for residency.
    tk = plan["tk"]
    kernel = functools.partial(
        _spmm_ktiled_kernel, relu=relu, n_valid=n_valid, tm=tm)
    bytes_accessed = (adj_p.size * 2 + (Np // tm) * support.size * 2
                      + bias.size * 4 + Np * Hp * out_itemsize)
    return pl.pallas_call(
        kernel,
        out_shape=jax.ShapeDtypeStruct((Np, Hp), out_dtype),
        grid_spec=pltpu.PrefetchScalarGridSpec(
            num_scalar_prefetch=0,
            grid=(Np // tm, Np // tk),                 # reduction axis last
            in_specs=[
                pl.BlockSpec((tm, tk), lambda i, k: (i, k)),
                pl.BlockSpec((tk, Hp), lambda i, k: (k, 0)),
                pl.BlockSpec((1, Hp), lambda i, k: (0, 0)),
            ],
            out_specs=pl.BlockSpec((tm, Hp), lambda i, k: (i, 0)),
            scratch_shapes=[pltpu.VMEM((tm, Hp), jnp.float32)],
        ),
        compiler_params=pltpu.CompilerParams(
            dimension_semantics=("parallel", "arbitrary"),
            vmem_limit_bytes=_VMEM_CAP,
        ),
        cost_estimate=pl.CostEstimate(
            flops=flops, transcendentals=0, bytes_accessed=bytes_accessed),
    )(adj_p, support, bias)


# --------------------------------------------------------------------------
# Planning + one-time preprocessing (hoisted off the forward path)
# --------------------------------------------------------------------------
def _pick_row_tile(Np):
    # Prefer the largest stripe that leaves an even number (>= 2) of grid
    # steps so both v7x TensorCores get work; fall back to >= 2 steps.
    for cand in (512, 256, 128):
        if Np % cand == 0 and (Np // cand) >= 2 and (Np // cand) % 2 == 0:
            return cand
    for cand in (512, 256, 128):
        if Np % cand == 0 and (Np // cand) >= 2:
            return cand
    return 128


def _pick_k_tile(K):
    if K <= 1024:
        return K
    for cand in (512, 256, 128):
        if K % cand == 0:
            return cand
    return 128


def make_plan(N, F, H, O):
    Np = _round_up(N, 256)
    Fp = _round_up(F, 128)
    Hp = _round_up(H, 128)
    Op = _round_up(O, 128)
    tm = _pick_row_tile(Np)
    tk = next(c for c in (512, 256, 128) if Np % c == 0)
    tkf1 = _pick_k_tile(Fp)
    tkf2 = _pick_k_tile(Hp)
    # Worst-case VMEM for the resident-support SpMM (bf16 ops, f32 output,
    # double-buffered specs). If it exceeds budget, use the k-tiled fallback.
    c_max = max(Hp, Op)
    resident_bytes = (2 * tm * Np * 2            # adj row stripes
                      + 2 * Np * c_max * 2       # resident support
                      + 2 * c_max * 4            # bias
                      + 2 * tm * c_max * 4)      # output stripes
    spmm_resident = resident_bytes <= _RESIDENT_BUDGET
    return dict(Np=Np, Fp=Fp, Hp=Hp, Op=Op, tm=tm, tk=tk,
                tkf1=tkf1, tkf2=tkf2, spmm_resident=spmm_resident)


def preprocess_adj(adj, plan):
    """One-time: pad to (Np, Np) and cast to bf16 (off the per-call path)."""
    return _pad2(adj, plan["Np"], plan["Np"]).astype(jnp.bfloat16)


def preprocess_params(w1, b1, w2, b2, plan):
    """One-time: pad weights/biases to lane-dense shapes; weights -> bf16."""
    w1p = _pad2(w1, plan["Fp"], plan["Hp"]).astype(jnp.bfloat16)
    w2p = _pad2(w2, plan["Hp"], plan["Op"]).astype(jnp.bfloat16)
    b1p = _pad2(b1, 1, plan["Hp"]).astype(jnp.float32)
    b2p = _pad2(b2, 1, plan["Op"]).astype(jnp.float32)
    return w1p, b1p, w2p, b2p


# --------------------------------------------------------------------------
# 2-layer GCN forward (jit this; adj/params already preprocessed)
# --------------------------------------------------------------------------
def gcn_forward(x, adj_p, w1p, b1p, w2p, b2p, *, plan, n_rows, n_out):
    xp = _pad2(x, plan["Np"], plan["Fp"]).astype(jnp.bfloat16)
    tm = plan["tm"]

    # Layer 1: relu( adj @ (x @ W1) + b1 )
    s1 = _matmul_xw(xp, w1p, tm=tm, tk=plan["tkf1"])            # (Np, Hp) bf16
    h = _spmm(adj_p, s1, b1p, relu=True, out_dtype=jnp.bfloat16,
              n_valid=n_rows, plan=plan)

    # dropout (eval mode, training=False) -> identity
    # TODO(synk): training-mode dropout would use pltpu.prng_seed + prng_random_bits.

    # Layer 2: adj @ (h @ W2) + b2
    s2 = _matmul_xw(h, w2p, tm=tm, tk=plan["tkf2"])             # (Np, Op) bf16
    out = _spmm(adj_p, s2, b2p, relu=False, out_dtype=jnp.float32,
                n_valid=n_rows, plan=plan)
    return out[:n_rows, :n_out]


def init_gcn_params(key, nfeat, nhid, nout):
    """Mimics GraphConvolution.reset_parameters:
    uniform(-1/sqrt(out_features), 1/sqrt(out_features)) for weight and bias."""
    k1, k2, k3, k4 = jax.random.split(key, 4)
    s1 = 1.0 / math.sqrt(nhid)
    s2 = 1.0 / math.sqrt(nout)
    w1 = jax.random.uniform(k1, (nfeat, nhid), jnp.float32, -s1, s1)
    b1 = jax.random.uniform(k2, (1, nhid), jnp.float32, -s1, s1)
    w2 = jax.random.uniform(k3, (nhid, nout), jnp.float32, -s2, s2)
    b2 = jax.random.uniform(k4, (1, nout), jnp.float32, -s2, s2)
    return w1, b1, w2, b2


if __name__ == "__main__":
    # Small synthetic problem: N=16 nodes, nfeat=8, nhid=32, nout=4
    N, nfeat, nhid, nout = 16, 8, 32, 4
    key = jax.random.PRNGKey(0)
    kx, kadj, kp = jax.random.split(key, 3)

    x = jax.random.normal(kx, (N, nfeat), jnp.float32)

    # Symmetric normalized adjacency with self-loops (typical GCN preprocessing).
    a = (jax.random.uniform(kadj, (N, N)) > 0.7).astype(jnp.float32)
    a = jnp.maximum(a, a.T) + jnp.eye(N, dtype=jnp.float32)
    deg = jnp.sum(a, axis=1)
    d_inv_sqrt = 1.0 / jnp.sqrt(deg)
    adj = a * d_inv_sqrt[:, None] * d_inv_sqrt[None, :]

    w1, b1, w2, b2 = init_gcn_params(kp, nfeat, nhid, nout)

    plan = make_plan(N, nfeat, nhid, nout)

    # One-time preprocessing (hoisted out of the per-call forward path).
    adj_p = preprocess_adj(adj, plan)
    w1p, b1p, w2p, b2p = preprocess_params(w1, b1, w2, b2, plan)

    fwd = jax.jit(functools.partial(gcn_forward, plan=plan, n_rows=N, n_out=nout))
    out = jax.block_until_ready(fwd(x, adj_p, w1p, b1p, w2p, b2p))
    assert out.shape == (N, nout)

    # Reference mimicking the kernel's bf16 operand casts (f32 accumulation).
    bf = lambda t: t.astype(jnp.bfloat16)
    s1 = jnp.dot(bf(x), bf(w1), preferred_element_type=jnp.float32)
    h_ref = jnp.maximum(
        jnp.dot(bf(adj), bf(s1), preferred_element_type=jnp.float32) + b1, 0.0
    )
    s2 = jnp.dot(bf(h_ref), bf(w2), preferred_element_type=jnp.float32)
    ref = jnp.dot(bf(adj), bf(s2), preferred_element_type=jnp.float32) + b2
    assert jnp.allclose(out, ref, atol=1e-2, rtol=1e-2), float(
        jnp.max(jnp.abs(out - ref))
    )

    # Loose sanity check against the pure f32 reference as well.
    h32 = jnp.maximum(adj @ (x @ w1) + b1, 0.0)
    ref32 = adj @ (h32 @ w2) + b2
    assert jnp.allclose(out, ref32, atol=5e-2, rtol=5e-2)

    print("KERNEL_OK")
</pallas_src>

<mosaic_0001>
module attributes {stable_mosaic.version = 11 : i64} {
  func.func @_xw_kernel(%arg0: i32, %arg1: i32, %arg2: memref<128x128xbf16, #tpu.memory_space<vmem>>, %arg3: memref<128x128xbf16, #tpu.memory_space<vmem>>, %arg4: memref<128x128xbf16, #tpu.memory_space<vmem>>, %arg5: memref<128x128xf32, #tpu.memory_space<vmem>>) attributes {dimension_semantics = [#tpu.dimension_semantics<parallel>, #tpu.dimension_semantics<arbitrary>], iteration_bounds = array<i64: 2, 1>, scalar_prefetch = 0 : i64, scratch_operands = 1 : i64, tpu.core_type = #tpu.core_type<tc>, window_params = [{transform_indices = @transform_0, window_bounds = array<i64: 128, 128>}, {transform_indices = @transform_1, window_bounds = array<i64: 128, 128>}, {transform_indices = @transform_2, window_bounds = array<i64: 128, 128>}]} {
    %c0_i32 = arith.constant 0 : i32
    %0 = arith.cmpi eq, %arg1, %c0_i32 : i32
    %1 = arith.extui %0 : i1 to i32
    %c0_i32_0 = arith.constant 0 : i32
    %2 = arith.cmpi ne, %1, %c0_i32_0 : i32
    scf.if %2 {
      %cst_10 = arith.constant 0.000000e+00 : f32
      %12 = vector.broadcast %cst_10 : f32 to vector<128x128xf32>
      %c0_11 = arith.constant 0 : index
      %c0_12 = arith.constant 0 : index
      %13 = vector.load %arg5[%c0_11, %c0_12] : memref<128x128xf32, #tpu.memory_space<vmem>>, vector<128x128xf32>
      tpu.vector_store %arg5[%c0_11, %c0_12], %12 {strides = array<i32>} : memref<128x128xf32, #tpu.memory_space<vmem>>, vector<128x128xf32>,
    } else {
    }
    %c0 = arith.constant 0 : index
    %c0_1 = arith.constant 0 : index
    %3 = vector.load %arg5[%c0, %c0_1] : memref<128x128xf32, #tpu.memory_space<vmem>>, vector<128x128xf32>
    %c0_2 = arith.constant 0 : index
    %c0_3 = arith.constant 0 : index
    %4 = vector.load %arg2[%c0_2, %c0_3] : memref<128x128xbf16, #tpu.memory_space<vmem>>, vector<128x128xbf16>
    %c0_4 = arith.constant 0 : index
    %c0_5 = arith.constant 0 : index
    %5 = vector.load %arg3[%c0_4, %c0_5] : memref<128x128xbf16, #tpu.memory_space<vmem>>, vector<128x128xbf16>
    %cst = arith.constant dense<0.000000e+00> : vector<128x128xf32>
    %6 = tpu.matmul %4, %5, %cst {dimension_numbers = #tpu.dot_dimension_numbers<[1], [0], [0], [1], [0, 0, 1, 1], [], []>} : vector<128x128xbf16>, vector<128x128xbf16>, vector<128x128xf32> -> vector<128x128xf32>
    %7 = arith.addf %3, %6 : vector<128x128xf32>
    %c0_6 = arith.constant 0 : index
    %c0_7 = arith.constant 0 : index
    %8 = vector.load %arg5[%c0_6, %c0_7] : memref<128x128xf32, #tpu.memory_space<vmem>>, vector<128x128xf32>
    tpu.vector_store %arg5[%c0_6, %c0_7], %7 {strides = array<i32>} : memref<128x128xf32, #tpu.memory_space<vmem>>, vector<128x128xf32>,
    %c0_i32_8 = arith.constant 0 : i32
    %9 = arith.cmpi eq, %arg1, %c0_i32_8 : i32
    %10 = arith.extui %9 : i1 to i32
    %c0_i32_9 = arith.constant 0 : i32
    %11 = arith.cmpi ne, %10, %c0_i32_9 : i32
    scf.if %11 {
      %c0_10 = arith.constant 0 : index
      %c0_11 = arith.constant 0 : index
      %12 = vector.load %arg5[%c0_10, %c0_11] : memref<128x128xf32, #tpu.memory_space<vmem>>, vector<128x128xf32>
      %13 = arith.truncf %12 : vector<128x128xf32> to vector<128x128xbf16>
      %c0_12 = arith.constant 0 : index
      %c0_13 = arith.constant 0 : index
      %14 = vector.load %arg4[%c0_12, %c0_13] : memref<128x128xbf16, #tpu.memory_space<vmem>>, vector<128x128xbf16>
      tpu.vector_store %arg4[%c0_12, %c0_13], %13 {strides = array<i32>} : memref<128x128xbf16, #tpu.memory_space<vmem>>, vector<128x128xbf16>,
    } else {
    }
    return
  }
  func.func @transform_0(%arg0: i32, %arg1: i32) -> (i32, i32) {
    %c0_i32 = arith.constant 0 : i32
    return %arg0, %arg1 : i32, i32
  }
  func.func @transform_1(%arg0: i32, %arg1: i32) -> (i32, i32) {
    %c0_i32 = arith.constant 0 : i32
    %c0_i32_0 = arith.constant 0 : i32
    return %arg1, %c0_i32 : i32, i32
  }
  func.func @transform_2(%arg0: i32, %arg1: i32) -> (i32, i32) {
    %c0_i32 = arith.constant 0 : i32
    %c0_i32_0 = arith.constant 0 : i32
    return %arg0, %c0_i32 : i32, i32
  }
}

module attributes {stable_mosaic.version = 11 : i64} {
  func.func @_xw_kernel(%arg0: i32, %arg1: i32, %arg2: memref<128x128xbf16, #tpu.memory_space<vmem>>, %arg3: memref<128x128xbf16, #tpu.memory_space<vmem>>, %arg4: memref<128x128xbf16, #tpu.memory_space<vmem>>, %arg5: memref<128x128xf32, #tpu.memory_space<vmem>>) attributes {dimension_semantics = [#tpu.dimension_semantics<parallel>, #tpu.dimension_semantics<arbitrary>], iteration_bounds = array<i64: 2, 1>, scalar_prefetch = 0 : i64, scratch_operands = 1 : i64, tpu.core_type = #tpu.core_type<tc>, window_params = [{transform_indices = @transform_0, window_bounds = array<i64: 128, 128>}, {transform_indices = @transform_1, window_bounds = array<i64: 128, 128>}, {transform_indices = @transform_2, window_bounds = array<i64: 128, 128>}]} {
    %c0_i32 = arith.constant 0 : i32
    %0 = arith.cmpi eq, %arg1, %c0_i32 : i32
    %1 = arith.extui %0 : i1 to i32
    %c0_i32_0 = arith.constant 0 : i32
    %2 = arith.cmpi ne, %1, %c0_i32_0 : i32
    scf.if %2 {
      %cst_10 = arith.constant 0.000000e+00 : f32
      %12 = vector.broadcast %cst_10 : f32 to vector<128x128xf32>
      %c0_11 = arith.constant 0 : index
      %c0_12 = arith.constant 0 : index
      %13 = vector.load %arg5[%c0_11, %c0_12] : memref<128x128xf32, #tpu.memory_space<vmem>>, vector<128x128xf32>
      tpu.vector_store %arg5[%c0_11, %c0_12], %12 {strides = array<i32>} : memref<128x128xf32, #tpu.memory_space<vmem>>, vector<128x128xf32>,
    } else {
    }
    %c0 = arith.constant 0 : index
    %c0_1 = arith.constant 0 : index
    %3 = vector.load %arg5[%c0, %c0_1] : memref<128x128xf32, #tpu.memory_space<vmem>>, vector<128x128xf32>
    %c0_2 = arith.constant 0 : index
    %c0_3 = arith.constant 0 : index
    %4 = vector.load %arg2[%c0_2, %c0_3] : memref<128x128xbf16, #tpu.memory_space<vmem>>, vector<128x128xbf16>
    %c0_4 = arith.constant 0 : index
    %c0_5 = arith.constant 0 : index
    %5 = vector.load %arg3[%c0_4, %c0_5] : memref<128x128xbf16, #tpu.memory_space<vmem>>, vector<128x128xbf16>
    %cst = arith.constant dense<0.000000e+00> : vector<128x128xf32>
    %6 = tpu.matmul %4, %5, %cst {dimension_numbers = #tpu.dot_dimension_numbers<[1], [0], [0], [1], [0, 0, 1, 1], [], []>} : vector<128x128xbf16>, vector<128x128xbf16>, vector<128x128xf32> -> vector<128x128xf32>
    %7 = arith.addf %3, %6 : vector<128x128xf32>
    %c0_6 = arith.constant 0 : index
    %c0_7 = arith.constant 0 : index
    %8 = vector.load %arg5[%c0_6, %c0_7] : memref<128x128xf32, #tpu.memory_space<vmem>>, vector<128x128xf32>
    tpu.vector_store %arg5[%c0_6, %c0_7], %7 {strides = array<i32>} : memref<128x128xf32, #tpu.memory_space<vmem>>, vector<128x128xf32>,
    %c0_i32_8 = arith.constant 0 : i32
    %9 = arith.cmpi eq, %arg1, %c0_i32_8 : i32
    %10 = arith.extui %9 : i1 to i32
    %c0_i32_9 = arith.constant 0 : i32
    %11 = arith.cmpi ne, %10, %c0_i32_9 : i32
    scf.if %11 {
      %c0_10 = arith.constant 0 : index
      %c0_11 = arith.constant 0 : index
      %12 = vector.load %arg5[%c0_10, %c0_11] : memref<128x128xf32, #tpu.memory_space<vmem>>, vector<128x128xf32>
      %13 = arith.truncf %12 : vector<128x128xf32> to vector<128x128xbf16>
      %c0_12 = arith.constant 0 : index
      %c0_13 = arith.constant 0 : index
      %14 = vector.load %arg4[%c0_12, %c0_13] : memref<128x128xbf16, #tpu.memory_space<vmem>>, vector<128x128xbf16>
      tpu.vector_store %arg4[%c0_12, %c0_13], %13 {strides = array<i32>} : memref<128x128xbf16, #tpu.memory_space<vmem>>, vector<128x128xbf16>,
    } else {
    }
    return
  }
  func.func @transform_0(%arg0: i32, %arg1: i32) -> (i32, i32) {
    %c0_i32 = arith.constant 0 : i32
    return %arg0, %arg1 : i32, i32
  }
  func.func @transform_1(%arg0: i32, %arg1: i32) -> (i32, i32) {
    %c0_i32 = arith.constant 0 : i32
    %c0_i32_0 = arith.constant 0 : i32
    return %arg1, %c0_i32 : i32, i32
  }
  func.func @transform_2(%arg0: i32, %arg1: i32) -> (i32, i32) {
    %c0_i32 = arith.constant 0 : i32
    %c0_i32_0 = arith.constant 0 : i32
    return %arg0, %c0_i32 : i32, i32
  }
}

module attributes {stable_mosaic.version = 11 : i64} {
  func.func @_spmm_resident_kernel(%arg0: i32, %arg1: memref<128x256xbf16, #tpu.memory_space<vmem>>, %arg2: memref<256x128xbf16, #tpu.memory_space<vmem>>, %arg3: memref<1x128xf32, #tpu.memory_space<vmem>>, %arg4: memref<128x128xf32, #tpu.memory_space<vmem>>) attributes {dimension_semantics = [#tpu.dimension_semantics<parallel>], iteration_bounds = array<i64: 2>, scalar_prefetch = 0 : i64, scratch_operands = 0 : i64, tpu.core_type = #tpu.core_type<tc>, window_params = [{transform_indices = @transform_0, window_bounds = array<i64: 128, 256>}, {pipeline_mode = #tpu.pipeline_mode<synchronous>, transform_indices = @transform_1, window_bounds = array<i64: 256, 128>}, {pipeline_mode = #tpu.pipeline_mode<synchronous>, transform_indices = @transform_2, window_bounds = array<i64: 1, 128>}, {transform_indices = @transform_3, window_bounds = array<i64: 128, 128>}]} {
    %c0 = arith.constant 0 : index
    %c0_0 = arith.constant 0 : index
    %0 = vector.load %arg1[%c0, %c0_0] : memref<128x256xbf16, #tpu.memory_space<vmem>>, vector<128x256xbf16>
    %c0_1 = arith.constant 0 : index
    %c0_2 = arith.constant 0 : index
    %1 = vector.load %arg2[%c0_1, %c0_2] : memref<256x128xbf16, #tpu.memory_space<vmem>>, vector<256x128xbf16>
    %cst = arith.constant dense<0.000000e+00> : vector<128x128xf32>
    %2 = tpu.matmul %0, %1, %cst {dimension_numbers = #tpu.dot_dimension_numbers<[1], [0], [0], [1], [0, 0, 1, 1], [], []>} : vector<128x256xbf16>, vector<256x128xbf16>, vector<128x128xf32> -> vector<128x128xf32>
    %c128_i32 = arith.constant 128 : i32
    %3 = arith.muli %arg0, %c128_i32 : i32
    %4 = tpu.iota {dimensions = array<i32: 0>} : vector<128x1xi32>
    %5 = vector.broadcast %3 : i32 to vector<128x1xi32>
    %6 = arith.addi %5, %4 : vector<128x1xi32>
    %c16_i32 = arith.constant 16 : i32
    %7 = vector.broadcast %c16_i32 : i32 to vector<128x1xi32>
    %8 = arith.cmpi slt, %6, %7 : vector<128x1xi32>
    %c0_3 = arith.constant 0 : index
    %c0_4 = arith.constant 0 : index
    %9 = vector.load %arg3[%c0_3, %c0_4] : memref<1x128xf32, #tpu.memory_space<vmem>>, vector<1x128xf32>
    %cst_5 = arith.constant 0.000000e+00 : f32
    %10 = vector.shape_cast %8 : vector<128x1xi1> to vector<128x1xi1>
    %11 = vector.broadcast %10 : vector<128x1xi1> to vector<128x128xi1>
    %12 = vector.shape_cast %9 : vector<1x128xf32> to vector<1x128xf32>
    %13 = vector.broadcast %12 : vector<1x128xf32> to vector<128x128xf32>
    %14 = vector.broadcast %cst_5 : f32 to vector<128x128xf32>
    %15 = arith.select %11, %13, %14 : vector<128x128xi1>, vector<128x128xf32>
    %16 = arith.addf %2, %15 : vector<128x128xf32>
    %c0_6 = arith.constant 0 : index
    %c0_7 = arith.constant 0 : index
    %17 = vector.load %arg4[%c0_6, %c0_7] : memref<128x128xf32, #tpu.memory_space<vmem>>, vector<128x128xf32>
    tpu.vector_store %arg4[%c0_6, %c0_7], %16 {strides = array<i32>} : memref<128x128xf32, #tpu.memory_space<vmem>>, vector<128x128xf32>,
    return
  }
  func.func @transform_0(%arg0: i32) -> (i32, i32) {
    %c0_i32 = arith.constant 0 : i32
    %c0_i32_0 = arith.constant 0 : i32
    return %arg0, %c0_i32 : i32, i32
  }
  func.func @transform_1(%arg0: i32) -> (i32, i32) {
    %c0_i32 = arith.constant 0 : i32
    %c0_i32_0 = arith.constant 0 : i32
    %c0_i32_1 = arith.constant 0 : i32
    return %c0_i32, %c0_i32_0 : i32, i32
  }
  func.func @transform_2(%arg0: i32) -> (i32, i32) {
    %c0_i32 = arith.constant 0 : i32
    %c0_i32_0 = arith.constant 0 : i32
    %c0_i32_1 = arith.constant 0 : i32
    return %c0_i32, %c0_i32_0 : i32, i32
  }
  func.func @transform_3(%arg0: i32) -> (i32, i32) {
    %c0_i32 = arith.constant 0 : i32
    %c0_i32_0 = arith.constant 0 : i32
    return %arg0, %c0_i32 : i32, i32
  }
}

module attributes {stable_mosaic.version = 11 : i64} {
  func.func @_spmm_resident_kernel(%arg0: i32, %arg1: memref<128x256xbf16, #tpu.memory_space<vmem>>, %arg2: memref<256x128xbf16, #tpu.memory_space<vmem>>, %arg3: memref<1x128xf32, #tpu.memory_space<vmem>>, %arg4: memref<128x128xbf16, #tpu.memory_space<vmem>>) attributes {dimension_semantics = [#tpu.dimension_semantics<parallel>], iteration_bounds = array<i64: 2>, scalar_prefetch = 0 : i64, scratch_operands = 0 : i64, tpu.core_type = #tpu.core_type<tc>, window_params = [{transform_indices = @transform_0, window_bounds = array<i64: 128, 256>}, {pipeline_mode = #tpu.pipeline_mode<synchronous>, transform_indices = @transform_1, window_bounds = array<i64: 256, 128>}, {pipeline_mode = #tpu.pipeline_mode<synchronous>, transform_indices = @transform_2, window_bounds = array<i64: 1, 128>}, {transform_indices = @transform_3, window_bounds = array<i64: 128, 128>}]} {
    %c0 = arith.constant 0 : index
    %c0_0 = arith.constant 0 : index
    %0 = vector.load %arg1[%c0, %c0_0] : memref<128x256xbf16, #tpu.memory_space<vmem>>, vector<128x256xbf16>
    %c0_1 = arith.constant 0 : index
    %c0_2 = arith.constant 0 : index
    %1 = vector.load %arg2[%c0_1, %c0_2] : memref<256x128xbf16, #tpu.memory_space<vmem>>, vector<256x128xbf16>
    %cst = arith.constant dense<0.000000e+00> : vector<128x128xf32>
    %2 = tpu.matmul %0, %1, %cst {dimension_numbers = #tpu.dot_dimension_numbers<[1], [0], [0], [1], [0, 0, 1, 1], [], []>} : vector<128x256xbf16>, vector<256x128xbf16>, vector<128x128xf32> -> vector<128x128xf32>
    %c128_i32 = arith.constant 128 : i32
    %3 = arith.muli %arg0, %c128_i32 : i32
    %4 = tpu.iota {dimensions = array<i32: 0>} : vector<128x1xi32>
    %5 = vector.broadcast %3 : i32 to vector<128x1xi32>
    %6 = arith.addi %5, %4 : vector<128x1xi32>
    %c16_i32 = arith.constant 16 : i32
    %7 = vector.broadcast %c16_i32 : i32 to vector<128x1xi32>
    %8 = arith.cmpi slt, %6, %7 : vector<128x1xi32>
    %c0_3 = arith.constant 0 : index
    %c0_4 = arith.constant 0 : index
    %9 = vector.load %arg3[%c0_3, %c0_4] : memref<1x128xf32, #tpu.memory_space<vmem>>, vector<1x128xf32>
    %cst_5 = arith.constant 0.000000e+00 : f32
    %10 = vector.shape_cast %8 : vector<128x1xi1> to vector<128x1xi1>
    %11 = vector.broadcast %10 : vector<128x1xi1> to vector<128x128xi1>
    %12 = vector.shape_cast %9 : vector<1x128xf32> to vector<1x128xf32>
    %13 = vector.broadcast %12 : vector<1x128xf32> to vector<128x128xf32>
    %14 = vector.broadcast %cst_5 : f32 to vector<128x128xf32>
    %15 = arith.select %11, %13, %14 : vector<128x128xi1>, vector<128x128xf32>
    %16 = arith.addf %2, %15 : vector<128x128xf32>
    %cst_6 = arith.constant 0.000000e+00 : f32
    %17 = vector.broadcast %cst_6 : f32 to vector<128x128xf32>
    %18 = arith.maximumf %16, %17 : vector<128x128xf32>
    %19 = arith.truncf %18 : vector<128x128xf32> to vector<128x128xbf16>
    %c0_7 = arith.constant 0 : index
    %c0_8 = arith.constant 0 : index
    %20 = vector.load %arg4[%c0_7, %c0_8] : memref<128x128xbf16, #tpu.memory_space<vmem>>, vector<128x128xbf16>
    tpu.vector_store %arg4[%c0_7, %c0_8], %19 {strides = array<i32>} : memref<128x128xbf16, #tpu.memory_space<vmem>>, vector<128x128xbf16>,
    return
  }
  func.func @transform_0(%arg0: i32) -> (i32, i32) {
    %c0_i32 = arith.constant 0 : i32
    %c0_i32_0 = arith.constant 0 : i32
    return %arg0, %c0_i32 : i32, i32
  }
  func.func @transform_1(%arg0: i32) -> (i32, i32) {
    %c0_i32 = arith.constant 0 : i32
    %c0_i32_0 = arith.constant 0 : i32
    %c0_i32_1 = arith.constant 0 : i32
    return %c0_i32, %c0_i32_0 : i32, i32
  }
  func.func @transform_2(%arg0: i32) -> (i32, i32) {
    %c0_i32 = arith.constant 0 : i32
    %c0_i32_0 = arith.constant 0 : i32
    %c0_i32_1 = arith.constant 0 : i32
    return %c0_i32, %c0_i32_0 : i32, i32
  }
  func.func @transform_3(%arg0: i32) -> (i32, i32) {
    %c0_i32 = arith.constant 0 : i32
    %c0_i32_0 = arith.constant 0 : i32
    return %arg0, %c0_i32 : i32, i32
  }
}

</mosaic_0001>

<llo_original>
// kernel: gcn_forward.7
$region0: #{gcn_forward.7}
  #allocation0 [shape = 'u32[]', space=smem, size = 0x4, offset = 0x4, fixed_abs, tag = 'smem constant byte address 0x4 - core index']
  #allocation1 [shape = 'u32[144,128]{1,0:T(1,128)}', space=vmem, size = 0x12000, scoped, tag = 'internal scratch']
  %s0 = inlined_call_operand.vmem [shape: bf16[256,256], index: 0, kind: input, shape index: {}]
  %s1 = inlined_call_operand.vmem [shape: bf16[256,128], index: 1, kind: input, shape index: {}]
  %s2 = inlined_call_operand.vmem [shape: f32[1,128], index: 2, kind: input, shape index: {}]
  %s3 = inlined_call_operand.vmem [shape: f32[256,128], index: 3, kind: output, shape index: {}]
  %s4 = sld [smem:[#allocation0]]
  $region45: #{gcn_forward.7} parent=0
    _
  %s6 = ssub.s32 1, %s4
  %s7 = scalar_select 0, %s6, %s4
  loop: start=0, step=1, limit=4
  $region2: #{gcn_forward.7} parent=0 // loop_pre_header
    _
  $region3: #{gcn_forward.7} parent=0 // loop_header
    %s9 = sphi 0, %s13
    %p10 = scmp.ge.s32.totalorder %s9, 4
    %s19 = sphi 0, %s21
    %s22 = sphi 0, %s19
    %s23 = sphi 0, %s22
    %s39 = sphi 0, %s23
    %s43 = sphi 0, %s43
    %s45 = sphi 0, %s43
    %s46 = sphi 0, %s45
    %s60 = sphi 0, %s46
    %s64 = sphi 0, %s64
    %s66 = sphi 0, %s64
    %s67 = sphi 0, %s66
    %s81 = sphi 0, %s67
    %s87 = sphi 0, %s89
    %s90 = sphi 0, %s87
    %s91 = sphi 0, %s90
    %s107 = sphi 0, %s91
  $region4: #{gcn_forward.7} parent=0 // loop_header_branch
    %12 = sbr.rel (%p10) target = $region8
  $region5: #{gcn_forward.7} parent=0 // loop_body
    %s14 = ssub.s32 %s9, 1
    %s15 = ssub.s32 %s9, 2
    %s16 = sadd.s32 %s9, 1
    %s17 = ssub.s32 %s9, %s16
    %p18 = scmp.eq.s32.totalorder %s17, 0
    %s20 = sadd.s32 %s19, 1
    %s21 = scalar_select %p18, %s19, %s20
    %p24 = pneg %p18
    %p25 = scmp.eq.s32.totalorder %s9, 1
    %p26 = por %p24, %p25
    %p27 = scmp.ne.s32.totalorder %s19, %s22
    %p28 = scmp.eq.s32.totalorder %s9, 0
    %p29 = por %p27, %p28
    %p30 = scmp.ne.s32.totalorder %s19, %s22
    %p31 = scmp.eq.s32.totalorder %s14, 1
    %p32 = por %p30, %p31
    %p33 = scmp.ne.s32.totalorder %s22, %s23
    %p34 = scmp.eq.s32.totalorder %s14, 0
    %p35 = por %p33, %p34
    %p36 = scmp.ne.s32.totalorder %s22, %s23
    %p37 = scmp.eq.s32.totalorder %s15, 1
    %p38 = por %p36, %p37
    %p40 = scmp.ne.s32.totalorder %s23, %s39
    %p41 = scmp.eq.s32.totalorder %s15, 0
    %p42 = por %p40, %p41
    %s44 = sadd.s32 %s43, 1
    %p47 = scmp.eq.s32.totalorder %s9, 1
    %p48 = scmp.ne.s32.totalorder %s43, %s45
    %p49 = scmp.eq.s32.totalorder %s9, 0
    %p50 = por %p48, %p49
    %p51 = scmp.ne.s32.totalorder %s43, %s45
    %p52 = scmp.eq.s32.totalorder %s14, 1
    %p53 = por %p51, %p52
    %p54 = scmp.ne.s32.totalorder %s45, %s46
    %p55 = scmp.eq.s32.totalorder %s14, 0
    %p56 = por %p54, %p55
    %p57 = scmp.ne.s32.totalorder %s45, %s46
    %p58 = scmp.eq.s32.totalorder %s15, 1
    %p59 = por %p57, %p58
    %p61 = scmp.ne.s32.totalorder %s46, %s60
    %p62 = scmp.eq.s32.totalorder %s15, 0
    %p63 = por %p61, %p62
    %s65 = sadd.s32 %s64, 1
    %p68 = scmp.eq.s32.totalorder %s9, 1
    %p69 = scmp.ne.s32.totalorder %s64, %s66
    %p70 = scmp.eq.s32.totalorder %s9, 0
    %p71 = por %p69, %p70
    %p72 = scmp.ne.s32.totalorder %s64, %s66
    %p73 = scmp.eq.s32.totalorder %s14, 1
    %p74 = por %p72, %p73
    %p75 = scmp.ne.s32.totalorder %s66, %s67
    %p76 = scmp.eq.s32.totalorder %s14, 0
    %p77 = por %p75, %p76
    %p78 = scmp.ne.s32.totalorder %s66, %s67
    %p79 = scmp.eq.s32.totalorder %s15, 1
    %p80 = por %p78, %p79
    %p82 = scmp.ne.s32.totalorder %s67, %s81
    %p83 = scmp.eq.s32.totalorder %s15, 0
    %p84 = por %p82, %p83
    %s85 = ssub.s32 %s9, %s16
    %p86 = scmp.eq.s32.totalorder %s85, 0
    %s88 = sadd.s32 %s87, 1
    %s89 = scalar_select %p86, %s87, %s88
    %p92 = pneg %p86
    %p93 = scmp.eq.s32.totalorder %s9, 1
    %p94 = por %p92, %p93
    %p95 = scmp.ne.s32.totalorder %s87, %s90
    %p96 = scmp.eq.s32.totalorder %s9, 0
    %p97 = por %p95, %p96
    %p98 = scmp.ne.s32.totalorder %s87, %s90
    %p99 = scmp.eq.s32.totalorder %s14, 1
    %p100 = por %p98, %p99
    %p101 = scmp.ne.s32.totalorder %s90, %s91
    %p102 = scmp.eq.s32.totalorder %s14, 0
    %p103 = por %p101, %p102
    %p104 = scmp.ne.s32.totalorder %s90, %s91
    %p105 = scmp.eq.s32.totalorder %s15, 1
    %p106 = por %p104, %p105
    %p108 = scmp.ne.s32.totalorder %s91, %s107
    %p109 = scmp.eq.s32.totalorder %s15, 0
    %p110 = por %p108, %p109
    %p111 = scmp.le.s32.totalorder 1, %s9
    %p112 = scmp.lt.s32.totalorder %s9, 3
    %p113 = pnand %p111, %p112
    %p114 = pneg %p113
    // Predicated region
    $region9: #{gcn_forward.7} parent=5 // pred_check
      _
    $region10: #{gcn_forward.7} parent=5 // pred_check_branch
      %116 = sbr.rel (%p113) target = $region12
    $region11: #{gcn_forward.7} parent=5 // pred_region
      %s117 = ssub.s32 %s9, 1
      // Predicated region
      $region13: #{gcn_forward.7} parent=11 // pred_check
        %p118 = pneg %p56
      $region14: #{gcn_forward.7} parent=11 // pred_check_branch
        %120 = sbr.rel (%p118) target = $region16
      $region15: #{gcn_forward.7} parent=11 // pred_region
        _
      $region16: #{gcn_forward.7} parent=11 // pred_fallthru
        _
      // Predicated region
      $region17: #{gcn_forward.7} parent=11 // pred_check
        %p121 = pneg %p77
      $region18: #{gcn_forward.7} parent=11 // pred_check_branch
        %123 = sbr.rel (%p121) target = $region20
      $region19: #{gcn_forward.7} parent=11 // pred_region
        _
      $region20: #{gcn_forward.7} parent=11 // pred_fallthru
        _
    $region12: #{gcn_forward.7} parent=5 // pred_fallthru
      _
    %p124 = scmp.lt.s32.totalorder %s9, 2
    // Predicated region
    $region21: #{gcn_forward.7} parent=5 // pred_check
      %p125 = pneg %p124
    $region22: #{gcn_forward.7} parent=5 // pred_check_branch
      %127 = sbr.rel (%p125) target = $region24
    $region23: #{gcn_forward.7} parent=5 // pred_region
      // Predicated region
      $region25: #{gcn_forward.7} parent=23 // pred_check
        %p128 = pneg %p29
      $region26: #{gcn_forward.7} parent=23 // pred_check_branch
        %130 = sbr.rel (%p128) target = $region28
      $region27: #{gcn_forward.7} parent=23 // pred_region
        %s131 = smul.u32 16, %s9
        %p132 = scmp.lt.s32.totalorder %s131, 31
        %s133 = scalar_select %p132, %s131, 31
        %s134 = smul.addr %s133, 2
        %s135 = smul.addr %s134, 4
        %s136 = scalar_lea.vmem %s0, %s135
        %s137 = smul.u32 16, %s9
      $region28: #{gcn_forward.7} parent=23 // pred_fallthru
        _
    $region24: #{gcn_forward.7} parent=5 // pred_fallthru
      _
    %p138 = scmp.le.s32.totalorder 1, %s9
    %p139 = scmp.lt.s32.totalorder %s9, 3
    %p140 = pnand %p138, %p139
    %p141 = pneg %p140
    // Predicated region
    $region29: #{gcn_forward.7} parent=5 // pred_check
      _
    $region30: #{gcn_forward.7} parent=5 // pred_check_branch
      %143 = sbr.rel (%p140) target = $region32
    $region31: #{gcn_forward.7} parent=5 // pred_region
      %s144 = ssub.s32 %s9, 1
      %s145 = smul.u32 16, %s14
      %p146 = scmp.lt.s32.totalorder %s145, 31
      %s147 = scalar_select %p146, %s145, 31
      %s148 = smul.addr %s147, 2
      %s149 = smul.addr %s148, 4
      %s150 = scalar_lea.vmem %s0, %s149
      %p151 = pneg %p35
      %p152 = pneg %p32
      %p153 = pneg %p56
      %p154 = pneg %p53
      %p155 = pneg %p77
      %p156 = pneg %p74
      %p157 = pneg %p103
      %p158 = pneg %p100
      %s159 = smul.u32 16, %s14
      %p160 = scmp.lt.s32.totalorder %s159, 31
      %s161 = scalar_select %p160, %s159, 31
      %s162 = smul.addr %s161, 8
      %s163 = scalar_lea.vmem %s3, %s162
      %s164 = smul.u32 16, %s14
      %p165 = scmp.lt.s32.totalorder %s164, 31
      %s166 = scalar_select %p165, %s164, 31
      %s167 = smul.addr %s166, 2
      %s168 = smul.addr %s167, 4
      %s169 = scalar_lea.vmem %s0, %s168
      %s170 = smul.u32 16, %s14
      %s171 = smul.u32 16, %s14
      %p172 = scmp.lt.s32.totalorder %s171, 31
      %s173 = scalar_select %p172, %s171, 31
      %s174 = smul.addr %s173, 8
      %s175 = scalar_lea.vmem %s3, %s174
      %s176 = smul.u32 16, %s14
      %v178 = vld [vmem:[%s169] sm:$0xff]
      %v179 = vld [vmem:[%s169 + $0x8] sm:$0xff]
      %v180 = vld [vmem:[%s169 + $0x10] sm:$0xff]
      %v181 = vld [vmem:[%s169 + $0x18] sm:$0xff]
      %v182 = vld [vmem:[%s169 + $0x20] sm:$0xff]
      %v183 = vld [vmem:[%s169 + $0x28] sm:$0xff]
      %v184 = vld [vmem:[%s169 + $0x30] sm:$0xff]
      %v185 = vld [vmem:[%s169 + $0x38] sm:$0xff]
      %v186 = vld [vmem:[%s169 + $0x40] sm:$0xff]
      %v187 = vld [vmem:[%s169 + $0x48] sm:$0xff]
      %v188 = vld [vmem:[%s169 + $0x50] sm:$0xff]
      %v189 = vld [vmem:[%s169 + $0x58] sm:$0xff]
      %v190 = vld [vmem:[%s169 + $0x60] sm:$0xff]
      %v191 = vld [vmem:[%s169 + $0x68] sm:$0xff]
      %v192 = vld [vmem:[%s169 + $0x70] sm:$0xff]
      %v193 = vld [vmem:[%s169 + $0x78] sm:$0xff]
      %v194 = vld [vmem:[%s1] sm:$0xf]
      %v195 = vld [vmem:[%s1 + $0x4] sm:$0xf]
      %v196 = vld [vmem:[%s1 + $0x8] sm:$0xf]
      %v197 = vld [vmem:[%s1 + $0xc] sm:$0xf]
      %v198 = vld [vmem:[%s1 + $0x10] sm:$0xf]
      %v199 = vld [vmem:[%s1 + $0x14] sm:$0xf]
      %v200 = vld [vmem:[%s1 + $0x18] sm:$0xf]
      %v201 = vld [vmem:[%s1 + $0x1c] sm:$0xf]
      %v202 = vld [vmem:[%s1 + $0x20] sm:$0xf]
      %v203 = vld [vmem:[%s1 + $0x24] sm:$0xf]
      %v204 = vld [vmem:[%s1 + $0x28] sm:$0xf]
      %v205 = vld [vmem:[%s1 + $0x2c] sm:$0xf]
      %v206 = vld [vmem:[%s1 + $0x30] sm:$0xf]
      %v207 = vld [vmem:[%s1 + $0x34] sm:$0xf]
      %v208 = vld [vmem:[%s1 + $0x38] sm:$0xf]
      %v209 = vld [vmem:[%s1 + $0x3c] sm:$0xf]
      %v210 = vld [vmem:[%s1 + $0x40] sm:$0xf]
      %v211 = vld [vmem:[%s1 + $0x44] sm:$0xf]
      %v212 = vld [vmem:[%s1 + $0x48] sm:$0xf]
      %v213 = vld [vmem:[%s1 + $0x4c] sm:$0xf]
      %v214 = vld [vmem:[%s1 + $0x50] sm:$0xf]
      %v215 = vld [vmem:[%s1 + $0x54] sm:$0xf]
      %v216 = vld [vmem:[%s1 + $0x58] sm:$0xf]
      %v217 = vld [vmem:[%s1 + $0x5c] sm:$0xf]
      %v218 = vld [vmem:[%s1 + $0x60] sm:$0xf]
      %v219 = vld [vmem:[%s1 + $0x64] sm:$0xf]
      %v220 = vld [vmem:[%s1 + $0x68] sm:$0xf]
      %v221 = vld [vmem:[%s1 + $0x6c] sm:$0xf]
      %v222 = vld [vmem:[%s1 + $0x70] sm:$0xf]
      %v223 = vld [vmem:[%s1 + $0x74] sm:$0xf]
      %v224 = vld [vmem:[%s1 + $0x78] sm:$0xf]
      %v225 = vld [vmem:[%s1 + $0x7c] sm:$0xf]
      %s226 = smul.u32 %s14, 128
      %v227 = vlaneseq
      %v228 = vshrl.u32 %v227, 7
      %v229 = vadd.s32 %v228, 8
      %v230 = vadd.s32 %v228, 16
      %v231 = vadd.s32 %v228, 24
      %v232 = vadd.s32 %v228, 32
      %v233 = vadd.s32 %v228, 40
      %v234 = vadd.s32 %v228, 48
      %v235 = vadd.s32 %v228, 56
      %v236 = vadd.s32 %v228, 64
      %v237 = vadd.s32 %v228, 72
      %v238 = vadd.s32 %v228, 80
      %v239 = vadd.s32 %v228, 88
      %v240 = vadd.s32 %v228, 96
      %v241 = vadd.s32 %v228, 104
      %v242 = vadd.s32 %v228, 112
      %v243 = vadd.s32 %v228, 120
      %v244 = vstv %s226
      %v245 = vadd.s32 %v244, %v228
      %v246 = vadd.s32 %v244, %v229
      %v247 = vadd.s32 %v244, %v230
      %v248 = vadd.s32 %v244, %v231
      %v249 = vadd.s32 %v244, %v232
      %v250 = vadd.s32 %v244, %v233
      %v251 = vadd.s32 %v244, %v234
      %v252 = vadd.s32 %v244, %v235
      %v253 = vadd.s32 %v244, %v236
      %v254 = vadd.s32 %v244, %v237
      %v255 = vadd.s32 %v244, %v238
      %v256 = vadd.s32 %v244, %v239
      %v257 = vadd.s32 %v244, %v240
      %v258 = vadd.s32 %v244, %v241
      %v259 = vadd.s32 %v244, %v242
      %v260 = vadd.s32 %v244, %v243
      %vm261 = vcmp.lt.s32.totalorder %v245, 16
      %vm262 = vcmp.lt.s32.totalorder %v246, 16
      %vm263 = vcmp.lt.s32.totalorder %v247, 16
      %vm264 = vcmp.lt.s32.totalorder %v248, 16
      %vm265 = vcmp.lt.s32.totalorder %v249, 16
      %vm266 = vcmp.lt.s32.totalorder %v250, 16
      %vm267 = vcmp.lt.s32.totalorder %v251, 16
      %vm268 = vcmp.lt.s32.totalorder %v252, 16
      %vm269 = vcmp.lt.s32.totalorder %v253, 16
      %vm270 = vcmp.lt.s32.totalorder %v254, 16
      %vm271 = vcmp.lt.s32.totalorder %v255, 16
      %vm272 = vcmp.lt.s32.totalorder %v256, 16
      %vm273 = vcmp.lt.s32.totalorder %v257, 16
      %vm274 = vcmp.lt.s32.totalorder %v258, 16
      %vm275 = vcmp.lt.s32.totalorder %v259, 16
      %vm276 = vcmp.lt.s32.totalorder %v260, 16
      %v277 = vld [vmem:[%s2] sm:$0x1]
      %v278 = vsel %vm261, 1, 0
      %v279 = vsel %vm262, 1, 0
      %v280 = vsel %vm263, 1, 0
      %v281 = vsel %vm264, 1, 0
      %v282 = vsel %vm265, 1, 0
      %v283 = vsel %vm266, 1, 0
      %v284 = vsel %vm267, 1, 0
      %v285 = vsel %vm268, 1, 0
      %v286 = vsel %vm269, 1, 0
      %v287 = vsel %vm270, 1, 0
      %v288 = vsel %vm271, 1, 0
      %v289 = vsel %vm272, 1, 0
      %v290 = vsel %vm273, 1, 0
      %v291 = vsel %vm274, 1, 0
      %v292 = vsel %vm275, 1, 0
      %v293 = vsel %vm276, 1, 0
      %vm294 = vcmp.eq.s32.totalorder %v278, 1
      %vm295 = vcmp.eq.s32.totalorder %v279, 1
      %vm296 = vcmp.eq.s32.totalorder %v280, 1
      %vm297 = vcmp.eq.s32.totalorder %v281, 1
      %vm298 = vcmp.eq.s32.totalorder %v282, 1
      %vm299 = vcmp.eq.s32.totalorder %v283, 1
      %vm300 = vcmp.eq.s32.totalorder %v284, 1
      %vm301 = vcmp.eq.s32.totalorder %v285, 1
      %vm302 = vcmp.eq.s32.totalorder %v286, 1
      %vm303 = vcmp.eq.s32.totalorder %v287, 1
      %vm304 = vcmp.eq.s32.totalorder %v288, 1
      %vm305 = vcmp.eq.s32.totalorder %v289, 1
      %vm306 = vcmp.eq.s32.totalorder %v290, 1
      %vm307 = vcmp.eq.s32.totalorder %v291, 1
      %vm308 = vcmp.eq.s32.totalorder %v292, 1
      %vm309 = vcmp.eq.s32.totalorder %v293, 1
      %v311 = vlaneseq
      %v312 = vshrl.u32 %v311, 7
      %v313 = vsub.s32 0, %v312
      %v314 = vrot.slane %v277, %v313
      %v316 = vsel %vm294, %v314, 0.0
      %v317 = vsel %vm295, %v314, 0.0
      %v318 = vsel %vm296, %v314, 0.0
      %v319 = vsel %vm297, %v314, 0.0
      %v320 = vsel %vm298, %v314, 0.0
      %v321 = vsel %vm299, %v314, 0.0
      %v322 = vsel %vm300, %v314, 0.0
      %v323 = vsel %vm301, %v314, 0.0
      %v324 = vsel %vm302, %v314, 0.0
      %v325 = vsel %vm303, %v314, 0.0
      %v326 = vsel %vm304, %v314, 0.0
      %v327 = vsel %vm305, %v314, 0.0
      %v328 = vsel %vm306, %v314, 0.0
      %v329 = vsel %vm307, %v314, 0.0
      %v330 = vsel %vm308, %v314, 0.0
      %v331 = vsel %vm309, %v314, 0.0
      %v348 = vunpack.c.l.b16 %v178
      %v349 = vunpack.c.h.b16 %v178
      %v350 = vunpack.c.l.b16 %v179
      %v351 = vunpack.c.h.b16 %v179
      %v352 = vunpack.c.l.b16 %v180
      %v353 = vunpack.c.h.b16 %v180
      %v354 = vunpack.c.l.b16 %v181
      %v355 = vunpack.c.h.b16 %v181
      %v356 = vunpack.c.l.b16 %v182
      %v357 = vunpack.c.h.b16 %v182
      %v358 = vunpack.c.l.b16 %v183
      %v359 = vunpack.c.h.b16 %v183
      %v360 = vunpack.c.l.b16 %v184
      %v361 = vunpack.c.h.b16 %v184
      %v362 = vunpack.c.l.b16 %v185
      %v363 = vunpack.c.h.b16 %v185
      %v364 = vunpack.c.l.b16 %v186
      %v365 = vunpack.c.h.b16 %v186
      %v366 = vunpack.c.l.b16 %v187
      %v367 = vunpack.c.h.b16 %v187
      %v368 = vunpack.c.l.b16 %v188
      %v369 = vunpack.c.h.b16 %v188
      %v370 = vunpack.c.l.b16 %v189
      %v371 = vunpack.c.h.b16 %v189
      %v372 = vunpack.c.l.b16 %v190
      %v373 = vunpack.c.h.b16 %v190
      %v374 = vunpack.c.l.b16 %v191
      %v375 = vunpack.c.h.b16 %v191
      %v376 = vunpack.c.l.b16 %v192
      %v377 = vunpack.c.h.b16 %v192
      %v378 = vunpack.c.l.b16 %v193
      %v379 = vunpack.c.h.b16 %v193
      %v380 = vpack.c.b16 %v350, %v348
      %v381 = vpack.c.b16 %v351, %v349
      %v382 = vpack.c.b16 %v354, %v352
      %v383 = vpack.c.b16 %v355, %v353
      %v384 = vpack.c.b16 %v358, %v356
      %v385 = vpack.c.b16 %v359, %v357
      %v386 = vpack.c.b16 %v362, %v360
      %v387 = vpack.c.b16 %v363, %v361
      %v388 = vpack.c.b16 %v366, %v364
      %v389 = vpack.c.b16 %v367, %v365
      %v390 = vpack.c.b16 %v370, %v368
      %v391 = vpack.c.b16 %v371, %v369
      %v392 = vpack.c.b16 %v374, %v372
      %v393 = vpack.c.b16 %v375, %v373
      %v394 = vpack.c.b16 %v378, %v376
      %v395 = vpack.c.b16 %v379, %v377
      %v444 = vunpack.c.l.b16 %v194
      %v445 = vunpack.c.l.b16 %v195
      %v446 = vunpack.c.l.b16 %v196
      %v447 = vunpack.c.l.b16 %v197
      %v448 = vunpack.c.l.b16 %v198
      %v449 = vunpack.c.l.b16 %v199
      %v450 = vunpack.c.l.b16 %v200
      %v451 = vunpack.c.l.b16 %v201
      %v452 = vunpack.c.l.b16 %v202
      %v453 = vunpack.c.l.b16 %v203
      %v454 = vunpack.c.l.b16 %v204
      %v455 = vunpack.c.l.b16 %v205
      %v456 = vunpack.c.l.b16 %v206
      %v457 = vunpack.c.l.b16 %v207
      %v458 = vunpack.c.l.b16 %v208
      %v459 = vunpack.c.l.b16 %v209
      %v460 = vunpack.c.l.b16 %v210
      %v461 = vunpack.c.l.b16 %v211
      %v462 = vunpack.c.l.b16 %v212
      %v463 = vunpack.c.l.b16 %v213
      %v464 = vunpack.c.l.b16 %v214
      %v465 = vunpack.c.l.b16 %v215
      %v466 = vunpack.c.l.b16 %v216
      %v467 = vunpack.c.l.b16 %v217
      %v468 = vunpack.c.l.b16 %v218
      %v469 = vunpack.c.l.b16 %v219
      %v470 = vunpack.c.l.b16 %v220
      %v471 = vunpack.c.l.b16 %v221
      %v472 = vunpack.c.l.b16 %v222
      %v473 = vunpack.c.l.b16 %v223
      %v474 = vunpack.c.l.b16 %v224
      %v475 = vunpack.c.l.b16 %v225
      %v476 = vpack.c.b16 %v445, %v444
      %v477 = vpack.c.b16 %v447, %v446
      %v478 = vpack.c.b16 %v449, %v448
      %v479 = vpack.c.b16 %v451, %v450
      %v480 = vpack.c.b16 %v453, %v452
      %v481 = vpack.c.b16 %v455, %v454
      %v482 = vpack.c.b16 %v457, %v456
      %v483 = vpack.c.b16 %v459, %v458
      %v484 = vpack.c.b16 %v461, %v460
      %v485 = vpack.c.b16 %v463, %v462
      %v486 = vpack.c.b16 %v465, %v464
      %v487 = vpack.c.b16 %v467, %v466
      %v488 = vpack.c.b16 %v469, %v468
      %v489 = vpack.c.b16 %v471, %v470
      %v490 = vpack.c.b16 %v473, %v472
      %v491 = vpack.c.b16 %v475, %v474
      %508 = vmatprep.subr.bf16.mxu0 0
      %509 = vmatpush1.bf16.msra.mxu0 %v476
      %510 = vmatprep.subr.bf16.mxu0 0
      %511 = vmatpush1.bf16.msra.mxu0 %v477
      %512 = vmatprep.subr.bf16.mxu0 0
      %513 = vmatpush1.bf16.msra.mxu0 %v478
      %514 = vmatprep.subr.bf16.mxu0 0
      %515 = vmatpush1.bf16.msra.mxu0 %v479
      %516 = vmatprep.subr.bf16.mxu0 0
      %517 = vmatpush1.bf16.msra.mxu0 %v480
      %518 = vmatprep.subr.bf16.mxu0 0
      %519 = vmatpush1.bf16.msra.mxu0 %v481
      %520 = vmatprep.subr.bf16.mxu0 0
      %521 = vmatpush1.bf16.msra.mxu0 %v482
      %522 = vmatprep.subr.bf16.mxu0 0
      %523 = vmatpush1.bf16.msra.mxu0 %v483
      %524 = vmatprep.subr.bf16.mxu0 0
      %525 = vmatpush1.bf16.msra.mxu0 %v484
      %526 = vmatprep.subr.bf16.mxu0 0
      %527 = vmatpush1.bf16.msra.mxu0 %v485
      %528 = vmatprep.subr.bf16.mxu0 0
      %529 = vmatpush1.bf16.msra.mxu0 %v486
      %530 = vmatprep.subr.bf16.mxu0 0
      %531 = vmatpush1.bf16.msra.mxu0 %v487
      %532 = vmatprep.subr.bf16.mxu0 0
      %533 = vmatpush1.bf16.msra.mxu0 %v488
      %534 = vmatprep.subr.bf16.mxu0 0
      %535 = vmatpush1.bf16.msra.mxu0 %v489
      %536 = vmatprep.subr.bf16.mxu0 0
      %537 = vmatpush1.bf16.msra.mxu0 %v490
      %538 = vmatprep.subr.bf16.mxu0 0
      %539 = vmatpush1.bf16.msra.mxu0 %v491
      %540 = vmatprep.mubr.bf16.mxu0 %v381
      %541 = vmatmul.mubr.bf16.gmra.mrb[0].mxu0 %v380
      %v542 = vpop.f32.mrb[0].mxu0
      %v543 = vadd.f32 %v316, %v542
      %v544 = vpop.f32.mrb[0].mxu0
      %v545 = vpop.f32.mrb[0].mxu0
      %v546 = vadd.f32 %v317, %v545
      %v547 = vpop.f32.mrb[0].mxu0
      %548 = vmatprep.mubr.bf16.mxu0 %v383
      %549 = vmatmul.mubr.bf16.gmra.mrb[0].mxu0 %v382
      %v550 = vpop.f32.mrb[0].mxu0
      %v551 = vadd.f32 %v318, %v550
      %v552 = vpop.f32.mrb[0].mxu0
      %v553 = vpop.f32.mrb[0].mxu0
      %v554 = vadd.f32 %v319, %v553
      %v555 = vpop.f32.mrb[0].mxu0
      %556 = vmatprep.mubr.bf16.mxu0 %v385
      %557 = vmatmul.mubr.bf16.gmra.mrb[0].mxu0 %v384
      %v558 = vpop.f32.mrb[0].mxu0
      %v559 = vadd.f32 %v320, %v558
      %v560 = vpop.f32.mrb[0].mxu0
      %v561 = vpop.f32.mrb[0].mxu0
      %v562 = vadd.f32 %v321, %v561
      %v563 = vpop.f32.mrb[0].mxu0
      %564 = vmatprep.mubr.bf16.mxu0 %v387
      %565 = vmatmul.mubr.bf16.gmra.mrb[0].mxu0 %v386
      %v566 = vpop.f32.mrb[0].mxu0
      %v567 = vadd.f32 %v322, %v566
      %v568 = vpop.f32.mrb[0].mxu0
      %v569 = vpop.f32.mrb[0].mxu0
      %v570 = vadd.f32 %v323, %v569
      %v571 = vpop.f32.mrb[0].mxu0
      %572 = vmatprep.mubr.bf16.mxu0 %v389
      %573 = vmatmul.mubr.bf16.gmra.mrb[0].mxu0 %v388
      %v574 = vpop.f32.mrb[0].mxu0
      %v575 = vadd.f32 %v324, %v574
      %v576 = vpop.f32.mrb[0].mxu0
      %v577 = vpop.f32.mrb[0].mxu0
      %v578 = vadd.f32 %v325, %v577
      %v579 = vpop.f32.mrb[0].mxu0
      %580 = vmatprep.mubr.bf16.mxu0 %v391
      %581 = vmatmul.mubr.bf16.gmra.mrb[0].mxu0 %v390
      %v582 = vpop.f32.mrb[0].mxu0
      %v583 = vadd.f32 %v326, %v582
      %v584 = vpop.f32.mrb[0].mxu0
      %v585 = vpop.f32.mrb[0].mxu0
      %v586 = vadd.f32 %v327, %v585
      %v587 = vpop.f32.mrb[0].mxu0
      %588 = vmatprep.mubr.bf16.mxu0 %v393
      %589 = vmatmul.mubr.bf16.gmra.mrb[0].mxu0 %v392
      %v590 = vpop.f32.mrb[0].mxu0
      %v591 = vadd.f32 %v328, %v590
      %v592 = vpop.f32.mrb[0].mxu0
      %v593 = vpop.f32.mrb[0].mxu0
      %v594 = vadd.f32 %v329, %v593
      %v595 = vpop.f32.mrb[0].mxu0
      %596 = vmatprep.mubr.bf16.mxu0 %v395
      %597 = vmatmul.mubr.bf16.gmra.mrb[0].mxu0 %v394
      %v598 = vpop.f32.mrb[0].mxu0
      %v599 = vadd.f32 %v330, %v598
      %v600 = vpop.f32.mrb[0].mxu0
      %v601 = vpop.f32.mrb[0].mxu0
      %v602 = vadd.f32 %v331, %v601
      %v603 = vpop.f32.mrb[0].mxu0
      %604 = vdwg.mxu0
      %605 = vst [vmem:[%s175] sm:$0xff] %v543
      %606 = vst [vmem:[%s175 + $0x8] sm:$0xff] %v546
      %607 = vst [vmem:[%s175 + $0x10] sm:$0xff] %v551
      %608 = vst [vmem:[%s175 + $0x18] sm:$0xff] %v554
      %609 = vst [vmem:[%s175 + $0x20] sm:$0xff] %v559
      %610 = vst [vmem:[%s175 + $0x28] sm:$0xff] %v562
      %611 = vst [vmem:[%s175 + $0x30] sm:$0xff] %v567
      %612 = vst [vmem:[%s175 + $0x38] sm:$0xff] %v570
      %613 = vst [vmem:[%s175 + $0x40] sm:$0xff] %v575
      %614 = vst [vmem:[%s175 + $0x48] sm:$0xff] %v578
      %615 = vst [vmem:[%s175 + $0x50] sm:$0xff] %v583
      %616 = vst [vmem:[%s175 + $0x58] sm:$0xff] %v586
      %617 = vst [vmem:[%s175 + $0x60] sm:$0xff] %v591
      %618 = vst [vmem:[%s175 + $0x68] sm:$0xff] %v594
      %619 = vst [vmem:[%s175 + $0x70] sm:$0xff] %v599
      %620 = vst [vmem:[%s175 + $0x78] sm:$0xff] %v602
      %s621 = smul.u32 16, %s14
      %p622 = scmp.lt.s32.totalorder %s621, 31
      %s623 = scalar_select %p622, %s621, 31
      %s624 = smul.addr %s623, 8
      %s625 = scalar_lea.vmem %s3, %s624
      // Predicated region
      $region33: #{gcn_forward.7} parent=31 // pred_check
        %p626 = pneg %p100
      $region34: #{gcn_forward.7} parent=31 // pred_check_branch
        %628 = sbr.rel (%p626) target = $region36
      $region35: #{gcn_forward.7} parent=31 // pred_region
        %s629 = smul.u32 16, %s14
      $region36: #{gcn_forward.7} parent=31 // pred_fallthru
        _
    $region32: #{gcn_forward.7} parent=5 // pred_fallthru
      _
    %p630 = scmp.le.s32.totalorder 2, %s9
    // Predicated region
    $region37: #{gcn_forward.7} parent=5 // pred_check
      %p631 = pneg %p630
    $region38: #{gcn_forward.7} parent=5 // pred_check_branch
      %633 = sbr.rel (%p631) target = $region40
    $region39: #{gcn_forward.7} parent=5 // pred_region
      %s634 = ssub.s32 %s9, 2
      // Predicated region
      $region41: #{gcn_forward.7} parent=39 // pred_check
        %p635 = pneg %p106
      $region42: #{gcn_forward.7} parent=39 // pred_check_branch
        %637 = sbr.rel (%p635) target = $region44
      $region43: #{gcn_forward.7} parent=39 // pred_region
        %s638 = smul.u32 16, %s15
        %p639 = scmp.lt.s32.totalorder %s638, 31
        %s640 = scalar_select %p639, %s638, 31
        %s641 = smul.addr %s640, 8
        %s642 = scalar_lea.vmem %s3, %s641
      $region44: #{gcn_forward.7} parent=39 // pred_fallthru
        _
    $region40: #{gcn_forward.7} parent=5 // pred_fallthru
      _
  $region6: #{gcn_forward.7} parent=0 // loop_footer
    %s13 = sadd.s32 1, %s9
  $region7: #{gcn_forward.7} parent=0 // loop_footer_branch
    %8 = sbr.rel target = $region3
  $region8: #{gcn_forward.7} parent=0 // loop_exit
    _

// kernel: gcn_forward.6
$region0: #{gcn_forward.6}
  #allocation0 [shape = 'u32[]', space=smem, size = 0x4, offset = 0x4, fixed_abs, tag = 'smem constant byte address 0x4 - core index']
  #allocation1 [shape = 'u32[144,128]{1,0:T(1,128)}', space=vmem, size = 0x12000, scoped, tag = 'internal scratch']
  #allocation2 [shape = 'f32[128,128]{1,0:T(8,128)}', space=vmem, size = 0x10000, scoped, tag = 'scratch operand']
  %s0 = inlined_call_operand.vmem [shape: bf16[256,128], index: 0, kind: input, shape index: {}]
  %s1 = inlined_call_operand.vmem [shape: bf16[128,128], index: 1, kind: input, shape index: {}]
  %s2 = inlined_call_operand.vmem [shape: bf16[256,128], index: 2, kind: output, shape index: {}]
  %s3 = sld [smem:[#allocation0]]
  $region49: #{gcn_forward.6} parent=0
    _
  %s5 = ssub.s32 1, %s3
  %s6 = scalar_select 0, %s5, %s3
  loop: start=0, step=1, limit=4
  $region2: #{gcn_forward.6} parent=0 // loop_pre_header
    _
  $region3: #{gcn_forward.6} parent=0 // loop_header
    %s8 = sphi 0, %s12
    %p9 = scmp.ge.s32.totalorder %s8, 4
    %s15 = sphi 0, %s27
    %s16 = sphi 0, %s23
    %s17 = sphi 0, %s15
    %s18 = sphi 0, %s16
    %s19 = sphi 0, %s17
    %s20 = sphi 0, %s18
    %s32 = sphi 0, %s34
    %s35 = sphi 0, %s32
    %s36 = sphi 0, %s35
    %s52 = sphi 0, %s36
    %s58 = sphi 0, %s60
    %s61 = sphi 0, %s58
    %s62 = sphi 0, %s61
    %s78 = sphi 0, %s62
    %s84 = sphi 0, %s86
    %s87 = sphi 0, %s84
    %s88 = sphi 0, %s87
    %s104 = sphi 0, %s88
  $region4: #{gcn_forward.6} parent=0 // loop_header_branch
    %11 = sbr.rel (%p9) target = $region8
  $region5: #{gcn_forward.6} parent=0 // loop_body
    %s13 = ssub.s32 %s8, 1
    %s14 = ssub.s32 %s8, 2
    %s21 = sadd.s32 1, %s16
    %p22 = scmp.ge.s32.totalorder %s21, 1
    %s23 = scalar_select %p22, 0, %s21
    %s24 = sadd.s32 1, %s15
    %s25 = scalar_select %p22, %s24, %s15
    %p26 = scmp.ge.s32.totalorder %s25, 2
    %s27 = scalar_select %p26, 0, %s25
    %s28 = ssub.s32 %s15, %s27
    %s29 = ssub.s32 %s16, %s23
    %s30 = sor.u32 %s28, %s29
    %p31 = scmp.eq.s32.totalorder %s30, 0
    %s33 = sadd.s32 %s32, 1
    %s34 = scalar_select %p31, %s32, %s33
    %p37 = pneg %p31
    %p38 = scmp.eq.s32.totalorder %s8, 1
    %p39 = por %p37, %p38
    %p40 = scmp.ne.s32.totalorder %s32, %s35
    %p41 = scmp.eq.s32.totalorder %s8, 0
    %p42 = por %p40, %p41
    %p43 = scmp.ne.s32.totalorder %s32, %s35
    %p44 = scmp.eq.s32.totalorder %s13, 1
    %p45 = por %p43, %p44
    %p46 = scmp.ne.s32.totalorder %s35, %s36
    %p47 = scmp.eq.s32.totalorder %s13, 0
    %p48 = por %p46, %p47
    %p49 = scmp.ne.s32.totalorder %s35, %s36
    %p50 = scmp.eq.s32.totalorder %s14, 1
    %p51 = por %p49, %p50
    %p53 = scmp.ne.s32.totalorder %s36, %s52
    %p54 = scmp.eq.s32.totalorder %s14, 0
    %p55 = por %p53, %p54
    %s56 = ssub.s32 %s16, %s23
    %p57 = scmp.eq.s32.totalorder %s56, 0
    %s59 = sadd.s32 %s58, 1
    %s60 = scalar_select %p57, %s58, %s59
    %p63 = pneg %p57
    %p64 = scmp.eq.s32.totalorder %s8, 1
    %p65 = por %p63, %p64
    %p66 = scmp.ne.s32.totalorder %s58, %s61
    %p67 = scmp.eq.s32.totalorder %s8, 0
    %p68 = por %p66, %p67
    %p69 = scmp.ne.s32.totalorder %s58, %s61
    %p70 = scmp.eq.s32.totalorder %s13, 1
    %p71 = por %p69, %p70
    %p72 = scmp.ne.s32.totalorder %s61, %s62
    %p73 = scmp.eq.s32.totalorder %s13, 0
    %p74 = por %p72, %p73
    %p75 = scmp.ne.s32.totalorder %s61, %s62
    %p76 = scmp.eq.s32.totalorder %s14, 1
    %p77 = por %p75, %p76
    %p79 = scmp.ne.s32.totalorder %s62, %s78
    %p80 = scmp.eq.s32.totalorder %s14, 0
    %p81 = por %p79, %p80
    %s82 = ssub.s32 %s15, %s27
    %p83 = scmp.eq.s32.totalorder %s82, 0
    %s85 = sadd.s32 %s84, 1
    %s86 = scalar_select %p83, %s84, %s85
    %p89 = pneg %p83
    %p90 = scmp.eq.s32.totalorder %s8, 1
    %p91 = por %p89, %p90
    %p92 = scmp.ne.s32.totalorder %s84, %s87
    %p93 = scmp.eq.s32.totalorder %s8, 0
    %p94 = por %p92, %p93
    %p95 = scmp.ne.s32.totalorder %s84, %s87
    %p96 = scmp.eq.s32.totalorder %s13, 1
    %p97 = por %p95, %p96
    %p98 = scmp.ne.s32.totalorder %s87, %s88
    %p99 = scmp.eq.s32.totalorder %s13, 0
    %p100 = por %p98, %p99
    %p101 = scmp.ne.s32.totalorder %s87, %s88
    %p102 = scmp.eq.s32.totalorder %s14, 1
    %p103 = por %p101, %p102
    %p105 = scmp.ne.s32.totalorder %s88, %s104
    %p106 = scmp.eq.s32.totalorder %s14, 0
    %p107 = por %p105, %p106
    %p108 = scmp.le.s32.totalorder 1, %s8
    %p109 = scmp.lt.s32.totalorder %s8, 3
    %p110 = pnand %p108, %p109
    %p111 = pneg %p110
    // Predicated region
    $region9: #{gcn_forward.6} parent=5 // pred_check
      _
    $region10: #{gcn_forward.6} parent=5 // pred_check_branch
      %113 = sbr.rel (%p110) target = $region12
    $region11: #{gcn_forward.6} parent=5 // pred_region
      %s114 = ssub.s32 %s8, 1
      // Predicated region
      $region13: #{gcn_forward.6} parent=11 // pred_check
        %p115 = pneg %p74
      $region14: #{gcn_forward.6} parent=11 // pred_check_branch
        %117 = sbr.rel (%p115) target = $region16
      $region15: #{gcn_forward.6} parent=11 // pred_region
        %s118 = smul.u32 16, %s18
        %p119 = scmp.lt.s32.totalorder %s118, 15
        %s120 = scalar_select %p119, %s118, 15
        %s121 = smul.addr %s120, 4
        %s122 = scalar_lea.vmem %s1, %s121
        %s123 = smul.u32 16, %s18
      $region16: #{gcn_forward.6} parent=11 // pred_fallthru
        _
    $region12: #{gcn_forward.6} parent=5 // pred_fallthru
      _
    %p124 = scmp.lt.s32.totalorder %s8, 2
    // Predicated region
    $region17: #{gcn_forward.6} parent=5 // pred_check
      %p125 = pneg %p124
    $region18: #{gcn_forward.6} parent=5 // pred_check_branch
      %127 = sbr.rel (%p125) target = $region20
    $region19: #{gcn_forward.6} parent=5 // pred_region
      // Predicated region
      $region21: #{gcn_forward.6} parent=19 // pred_check
        %p128 = pneg %p42
      $region22: #{gcn_forward.6} parent=19 // pred_check_branch
        %130 = sbr.rel (%p128) target = $region24
      $region23: #{gcn_forward.6} parent=19 // pred_region
        %s131 = smul.u32 16, %s15
        %p132 = scmp.lt.s32.totalorder %s131, 31
        %s133 = scalar_select %p132, %s131, 31
        %p134 = scmp.lt.s32.totalorder %s16, 0
        %s135 = scalar_select %p134, %s16, 0
        %s136 = sadd.s32 %s135, %s133
        %s137 = smul.addr %s136, 4
        %s138 = scalar_lea.vmem %s0, %s137
        %s139 = smul.u32 16, %s15
      $region24: #{gcn_forward.6} parent=19 // pred_fallthru
        _
    $region20: #{gcn_forward.6} parent=5 // pred_fallthru
      _
    %p140 = scmp.le.s32.totalorder 1, %s8
    %p141 = scmp.lt.s32.totalorder %s8, 3
    %p142 = pnand %p140, %p141
    %p143 = pneg %p142
    // Predicated region
    $region25: #{gcn_forward.6} parent=5 // pred_check
      _
    $region26: #{gcn_forward.6} parent=5 // pred_check_branch
      %145 = sbr.rel (%p142) target = $region28
    $region27: #{gcn_forward.6} parent=5 // pred_region
      %s146 = ssub.s32 %s8, 1
      %s147 = smul.u32 16, %s17
      %p148 = scmp.lt.s32.totalorder %s147, 31
      %s149 = scalar_select %p148, %s147, 31
      %p150 = scmp.lt.s32.totalorder %s18, 0
      %s151 = scalar_select %p150, %s18, 0
      %s152 = sadd.s32 %s151, %s149
      %s153 = smul.addr %s152, 4
      %s154 = scalar_lea.vmem %s0, %s153
      %p155 = pneg %p48
      %p156 = pneg %p45
      %s157 = smul.u32 16, %s18
      %p158 = scmp.lt.s32.totalorder %s157, 15
      %s159 = scalar_select %p158, %s157, 15
      %s160 = smul.addr %s159, 4
      %s161 = scalar_lea.vmem %s1, %s160
      %p162 = pneg %p74
      %p163 = pneg %p71
      %p164 = pneg %p100
      %p165 = pneg %p97
      %s166 = smul.u32 16, %s17
      %p167 = scmp.lt.s32.totalorder %s166, 31
      %s168 = scalar_select %p167, %s166, 31
      %s169 = smul.addr %s168, 4
      %s170 = scalar_lea.vmem %s2, %s169
      %s171 = smul.u32 16, %s17
      %p172 = scmp.lt.s32.totalorder %s171, 31
      %s173 = scalar_select %p172, %s171, 31
      %p174 = scmp.lt.s32.totalorder %s18, 0
      %s175 = scalar_select %p174, %s18, 0
      %s176 = sadd.s32 %s175, %s173
      %s177 = smul.addr %s176, 4
      %s178 = scalar_lea.vmem %s0, %s177
      %s179 = smul.u32 16, %s17
      %s180 = smul.u32 16, %s18
      %p181 = scmp.lt.s32.totalorder %s180, 15
      %s182 = scalar_select %p181, %s180, 15
      %s183 = smul.addr %s182, 4
      %s184 = scalar_lea.vmem %s1, %s183
      %s185 = smul.u32 16, %s18
      %s186 = smul.u32 16, %s17
      %p187 = scmp.lt.s32.totalorder %s186, 31
      %s188 = scalar_select %p187, %s186, 31
      %s189 = smul.addr %s188, 4
      %s190 = scalar_lea.vmem %s2, %s189
      %s191 = smul.u32 16, %s17
      %p193 = scmp.eq.s32.totalorder %s18, 0
      // Predicated region
      $region29: #{gcn_forward.6} parent=27 // pred_check
        %p194 = pneg %p193
      $region30: #{gcn_forward.6} parent=27 // pred_check_branch
        %196 = sbr.rel (%p194) target = $region32
      $region31: #{gcn_forward.6} parent=27 // pred_region
        %197 = vst [vmem:[#allocation2] sm:$0xff] 0.0
        %198 = vst [vmem:[#allocation2 + $0x8] sm:$0xff] 0.0
        %199 = vst [vmem:[#allocation2 + $0x10] sm:$0xff] 0.0
        %200 = vst [vmem:[#allocation2 + $0x18] sm:$0xff] 0.0
        %201 = vst [vmem:[#allocation2 + $0x20] sm:$0xff] 0.0
        %202 = vst [vmem:[#allocation2 + $0x28] sm:$0xff] 0.0
        %203 = vst [vmem:[#allocation2 + $0x30] sm:$0xff] 0.0
        %204 = vst [vmem:[#allocation2 + $0x38] sm:$0xff] 0.0
        %205 = vst [vmem:[#allocation2 + $0x40] sm:$0xff] 0.0
        %206 = vst [vmem:[#allocation2 + $0x48] sm:$0xff] 0.0
        %207 = vst [vmem:[#allocation2 + $0x50] sm:$0xff] 0.0
        %208 = vst [vmem:[#allocation2 + $0x58] sm:$0xff] 0.0
        %209 = vst [vmem:[#allocation2 + $0x60] sm:$0xff] 0.0
        %210 = vst [vmem:[#allocation2 + $0x68] sm:$0xff] 0.0
        %211 = vst [vmem:[#allocation2 + $0x70] sm:$0xff] 0.0
        %212 = vst [vmem:[#allocation2 + $0x78] sm:$0xff] 0.0
      $region32: #{gcn_forward.6} parent=27 // pred_fallthru
        _
      %v213 = vld [vmem:[#allocation2] sm:$0xff]
      %v214 = vld [vmem:[#allocation2 + $0x8] sm:$0xff]
      %v215 = vld [vmem:[#allocation2 + $0x10] sm:$0xff]
      %v216 = vld [vmem:[#allocation2 + $0x18] sm:$0xff]
      %v217 = vld [vmem:[#allocation2 + $0x20] sm:$0xff]
      %v218 = vld [vmem:[#allocation2 + $0x28] sm:$0xff]
      %v219 = vld [vmem:[#allocation2 + $0x30] sm:$0xff]
      %v220 = vld [vmem:[#allocation2 + $0x38] sm:$0xff]
      %v221 = vld [vmem:[#allocation2 + $0x40] sm:$0xff]
      %v222 = vld [vmem:[#allocation2 + $0x48] sm:$0xff]
      %v223 = vld [vmem:[#allocation2 + $0x50] sm:$0xff]
      %v224 = vld [vmem:[#allocation2 + $0x58] sm:$0xff]
      %v225 = vld [vmem:[#allocation2 + $0x60] sm:$0xff]
      %v226 = vld [vmem:[#allocation2 + $0x68] sm:$0xff]
      %v227 = vld [vmem:[#allocation2 + $0x70] sm:$0xff]
      %v228 = vld [vmem:[#allocation2 + $0x78] sm:$0xff]
      %v229 = vld [vmem:[%s178] sm:$0xf]
      %v230 = vld [vmem:[%s178 + $0x4] sm:$0xf]
      %v231 = vld [vmem:[%s178 + $0x8] sm:$0xf]
      %v232 = vld [vmem:[%s178 + $0xc] sm:$0xf]
      %v233 = vld [vmem:[%s178 + $0x10] sm:$0xf]
      %v234 = vld [vmem:[%s178 + $0x14] sm:$0xf]
      %v235 = vld [vmem:[%s178 + $0x18] sm:$0xf]
      %v236 = vld [vmem:[%s178 + $0x1c] sm:$0xf]
      %v237 = vld [vmem:[%s178 + $0x20] sm:$0xf]
      %v238 = vld [vmem:[%s178 + $0x24] sm:$0xf]
      %v239 = vld [vmem:[%s178 + $0x28] sm:$0xf]
      %v240 = vld [vmem:[%s178 + $0x2c] sm:$0xf]
      %v241 = vld [vmem:[%s178 + $0x30] sm:$0xf]
      %v242 = vld [vmem:[%s178 + $0x34] sm:$0xf]
      %v243 = vld [vmem:[%s178 + $0x38] sm:$0xf]
      %v244 = vld [vmem:[%s178 + $0x3c] sm:$0xf]
      %v245 = vld [vmem:[%s184] sm:$0xf]
      %v246 = vld [vmem:[%s184 + $0x4] sm:$0xf]
      %v247 = vld [vmem:[%s184 + $0x8] sm:$0xf]
      %v248 = vld [vmem:[%s184 + $0xc] sm:$0xf]
      %v249 = vld [vmem:[%s184 + $0x10] sm:$0xf]
      %v250 = vld [vmem:[%s184 + $0x14] sm:$0xf]
      %v251 = vld [vmem:[%s184 + $0x18] sm:$0xf]
      %v252 = vld [vmem:[%s184 + $0x1c] sm:$0xf]
      %v253 = vld [vmem:[%s184 + $0x20] sm:$0xf]
      %v254 = vld [vmem:[%s184 + $0x24] sm:$0xf]
      %v255 = vld [vmem:[%s184 + $0x28] sm:$0xf]
      %v256 = vld [vmem:[%s184 + $0x2c] sm:$0xf]
      %v257 = vld [vmem:[%s184 + $0x30] sm:$0xf]
      %v258 = vld [vmem:[%s184 + $0x34] sm:$0xf]
      %v259 = vld [vmem:[%s184 + $0x38] sm:$0xf]
      %v260 = vld [vmem:[%s184 + $0x3c] sm:$0xf]
      %v277 = vunpack.c.l.b16 %v229
      %v278 = vunpack.c.l.b16 %v230
      %v279 = vunpack.c.l.b16 %v231
      %v280 = vunpack.c.l.b16 %v232
      %v281 = vunpack.c.l.b16 %v233
      %v282 = vunpack.c.l.b16 %v234
      %v283 = vunpack.c.l.b16 %v235
      %v284 = vunpack.c.l.b16 %v236
      %v285 = vunpack.c.l.b16 %v237
      %v286 = vunpack.c.l.b16 %v238
      %v287 = vunpack.c.l.b16 %v239
      %v288 = vunpack.c.l.b16 %v240
      %v289 = vunpack.c.l.b16 %v241
      %v290 = vunpack.c.l.b16 %v242
      %v291 = vunpack.c.l.b16 %v243
      %v292 = vunpack.c.l.b16 %v244
      %v293 = vpack.c.b16 %v278, %v277
      %v294 = vpack.c.b16 %v280, %v279
      %v295 = vpack.c.b16 %v282, %v281
      %v296 = vpack.c.b16 %v284, %v283
      %v297 = vpack.c.b16 %v286, %v285
      %v298 = vpack.c.b16 %v288, %v287
      %v299 = vpack.c.b16 %v290, %v289
      %v300 = vpack.c.b16 %v292, %v291
      %v325 = vunpack.c.l.b16 %v245
      %v326 = vunpack.c.l.b16 %v246
      %v327 = vunpack.c.l.b16 %v247
      %v328 = vunpack.c.l.b16 %v248
      %v329 = vunpack.c.l.b16 %v249
      %v330 = vunpack.c.l.b16 %v250
      %v331 = vunpack.c.l.b16 %v251
      %v332 = vunpack.c.l.b16 %v252
      %v333 = vunpack.c.l.b16 %v253
      %v334 = vunpack.c.l.b16 %v254
      %v335 = vunpack.c.l.b16 %v255
      %v336 = vunpack.c.l.b16 %v256
      %v337 = vunpack.c.l.b16 %v257
      %v338 = vunpack.c.l.b16 %v258
      %v339 = vunpack.c.l.b16 %v259
      %v340 = vunpack.c.l.b16 %v260
      %v341 = vpack.c.b16 %v326, %v325
      %v342 = vpack.c.b16 %v328, %v327
      %v343 = vpack.c.b16 %v330, %v329
      %v344 = vpack.c.b16 %v332, %v331
      %v345 = vpack.c.b16 %v334, %v333
      %v346 = vpack.c.b16 %v336, %v335
      %v347 = vpack.c.b16 %v338, %v337
      %v348 = vpack.c.b16 %v340, %v339
      %357 = vmatprep.subr.bf16.mxu0 0
      %358 = vmatpush1.bf16.msra.mxu0 %v341
      %359 = vmatprep.subr.bf16.mxu0 0
      %360 = vmatpush1.bf16.msra.mxu0 %v342
      %361 = vmatprep.subr.bf16.mxu0 0
      %362 = vmatpush1.bf16.msra.mxu0 %v343
      %363 = vmatprep.subr.bf16.mxu0 0
      %364 = vmatpush1.bf16.msra.mxu0 %v344
      %365 = vmatprep.subr.bf16.mxu0 0
      %366 = vmatpush1.bf16.msra.mxu0 %v345
      %367 = vmatprep.subr.bf16.mxu0 0
      %368 = vmatpush1.bf16.msra.mxu0 %v346
      %369 = vmatprep.subr.bf16.mxu0 0
      %370 = vmatpush1.bf16.msra.mxu0 %v347
      %371 = vmatprep.subr.bf16.mxu0 0
      %372 = vmatpush1.bf16.msra.mxu0 %v348
      %373 = vmatprep.subr.bf16.mxu0 0
      %374 = vmatpush1.bf16.msra.mxu0 0
      %375 = vmatprep.subr.bf16.mxu0 0
      %376 = vmatpush1.bf16.msra.mxu0 0
      %377 = vmatprep.subr.bf16.mxu0 0
      %378 = vmatpush1.bf16.msra.mxu0 0
      %379 = vmatprep.subr.bf16.mxu0 0
      %380 = vmatpush1.bf16.msra.mxu0 0
      %381 = vmatprep.subr.bf16.mxu0 0
      %382 = vmatpush1.bf16.msra.mxu0 0
      %383 = vmatprep.subr.bf16.mxu0 0
      %384 = vmatpush1.bf16.msra.mxu0 0
      %385 = vmatprep.subr.bf16.mxu0 0
      %386 = vmatpush1.bf16.msra.mxu0 0
      %387 = vmatprep.subr.bf16.mxu0 0
      %388 = vmatpush1.bf16.msra.mxu0 0
      %389 = vmatprep.mubr.bf16.mxu0 0
      %390 = vmatmul.mubr.bf16.gmra.mrb[0].mxu0 %v293
      %v391 = vpop.f32.mrb[0].mxu0
      %v392 = vadd.f32 0.0, %v391
      %v393 = vpop.f32.mrb[0].mxu0
      %v394 = vpop.f32.mrb[0].mxu0
      %v395 = vadd.f32 0.0, %v394
      %v396 = vpop.f32.mrb[0].mxu0
      %397 = vmatprep.mubr.bf16.mxu0 0
      %398 = vmatmul.mubr.bf16.gmra.mrb[0].mxu0 %v294
      %v399 = vpop.f32.mrb[0].mxu0
      %v400 = vadd.f32 0.0, %v399
      %v401 = vpop.f32.mrb[0].mxu0
      %v402 = vpop.f32.mrb[0].mxu0
      %v403 = vadd.f32 0.0, %v402
      %v404 = vpop.f32.mrb[0].mxu0
      %405 = vmatprep.mubr.bf16.mxu0 0
      %406 = vmatmul.mubr.bf16.gmra.mrb[0].mxu0 %v295
      %v407 = vpop.f32.mrb[0].mxu0
      %v408 = vadd.f32 0.0, %v407
      %v409 = vpop.f32.mrb[0].mxu0
      %v410 = vpop.f32.mrb[0].mxu0
      %v411 = vadd.f32 0.0, %v410
      %v412 = vpop.f32.mrb[0].mxu0
      %413 = vmatprep.mubr.bf16.mxu0 0
      %414 = vmatmul.mubr.bf16.gmra.mrb[0].mxu0 %v296
      %v415 = vpop.f32.mrb[0].mxu0
      %v416 = vadd.f32 0.0, %v415
      %v417 = vpop.f32.mrb[0].mxu0
      %v418 = vpop.f32.mrb[0].mxu0
      %v419 = vadd.f32 0.0, %v418
      %v420 = vpop.f32.mrb[0].mxu0
      %421 = vmatprep.mubr.bf16.mxu0 0
      %422 = vmatmul.mubr.bf16.gmra.mrb[0].mxu0 %v297
      %v423 = vpop.f32.mrb[0].mxu0
      %v424 = vadd.f32 0.0, %v423
      %v425 = vpop.f32.mrb[0].mxu0
      %v426 = vpop.f32.mrb[0].mxu0
      %v427 = vadd.f32 0.0, %v426
      %v428 = vpop.f32.mrb[0].mxu0
      %429 = vmatprep.mubr.bf16.mxu0 0
      %430 = vmatmul.mubr.bf16.gmra.mrb[0].mxu0 %v298
      %v431 = vpop.f32.mrb[0].mxu0
      %v432 = vadd.f32 0.0, %v431
      %v433 = vpop.f32.mrb[0].mxu0
      %v434 = vpop.f32.mrb[0].mxu0
      %v435 = vadd.f32 0.0, %v434
      %v436 = vpop.f32.mrb[0].mxu0
      %437 = vmatprep.mubr.bf16.mxu0 0
      %438 = vmatmul.mubr.bf16.gmra.mrb[0].mxu0 %v299
      %v439 = vpop.f32.mrb[0].mxu0
      %v440 = vadd.f32 0.0, %v439
      %v441 = vpop.f32.mrb[0].mxu0
      %v442 = vpop.f32.mrb[0].mxu0
      %v443 = vadd.f32 0.0, %v442
      %v444 = vpop.f32.mrb[0].mxu0
      %445 = vmatprep.mubr.bf16.mxu0 0
      %446 = vmatmul.mubr.bf16.gmra.mrb[0].mxu0 %v300
      %v447 = vpop.f32.mrb[0].mxu0
      %v448 = vadd.f32 0.0, %v447
      %v449 = vpop.f32.mrb[0].mxu0
      %v450 = vpop.f32.mrb[0].mxu0
      %v451 = vadd.f32 0.0, %v450
      %v452 = vpop.f32.mrb[0].mxu0
      %453 = vdwg.mxu0
      %v454 = vadd.f32 %v213, %v392
      %v455 = vadd.f32 %v214, %v395
      %v456 = vadd.f32 %v215, %v400
      %v457 = vadd.f32 %v216, %v403
      %v458 = vadd.f32 %v217, %v408
      %v459 = vadd.f32 %v218, %v411
      %v460 = vadd.f32 %v219, %v416
      %v461 = vadd.f32 %v220, %v419
      %v462 = vadd.f32 %v221, %v424
      %v463 = vadd.f32 %v222, %v427
      %v464 = vadd.f32 %v223, %v432
      %v465 = vadd.f32 %v224, %v435
      %v466 = vadd.f32 %v225, %v440
      %v467 = vadd.f32 %v226, %v443
      %v468 = vadd.f32 %v227, %v448
      %v469 = vadd.f32 %v228, %v451
      %470 = vst [vmem:[#allocation2] sm:$0xff] %v454
      %471 = vst [vmem:[#allocation2 + $0x8] sm:$0xff] %v455
      %472 = vst [vmem:[#allocation2 + $0x10] sm:$0xff] %v456
      %473 = vst [vmem:[#allocation2 + $0x18] sm:$0xff] %v457
      %474 = vst [vmem:[#allocation2 + $0x20] sm:$0xff] %v458
      %475 = vst [vmem:[#allocation2 + $0x28] sm:$0xff] %v459
      %476 = vst [vmem:[#allocation2 + $0x30] sm:$0xff] %v460
      %477 = vst [vmem:[#allocation2 + $0x38] sm:$0xff] %v461
      %478 = vst [vmem:[#allocation2 + $0x40] sm:$0xff] %v462
      %479 = vst [vmem:[#allocation2 + $0x48] sm:$0xff] %v463
      %480 = vst [vmem:[#allocation2 + $0x50] sm:$0xff] %v464
      %481 = vst [vmem:[#allocation2 + $0x58] sm:$0xff] %v465
      %482 = vst [vmem:[#allocation2 + $0x60] sm:$0xff] %v466
      %483 = vst [vmem:[#allocation2 + $0x68] sm:$0xff] %v467
      %484 = vst [vmem:[#allocation2 + $0x70] sm:$0xff] %v468
      %485 = vst [vmem:[#allocation2 + $0x78] sm:$0xff] %v469
      // Predicated region
      $region33: #{gcn_forward.6} parent=27 // pred_check
        %p486 = pneg %p193
      $region34: #{gcn_forward.6} parent=27 // pred_check_branch
        %488 = sbr.rel (%p486) target = $region36
      $region35: #{gcn_forward.6} parent=27 // pred_region
        %v489 = vld [vmem:[#allocation2] sm:$0xff]
        %v490 = vld [vmem:[#allocation2 + $0x8] sm:$0xff]
        %v491 = vld [vmem:[#allocation2 + $0x10] sm:$0xff]
        %v492 = vld [vmem:[#allocation2 + $0x18] sm:$0xff]
        %v493 = vld [vmem:[#allocation2 + $0x20] sm:$0xff]
        %v494 = vld [vmem:[#allocation2 + $0x28] sm:$0xff]
        %v495 = vld [vmem:[#allocation2 + $0x30] sm:$0xff]
        %v496 = vld [vmem:[#allocation2 + $0x38] sm:$0xff]
        %v497 = vld [vmem:[#allocation2 + $0x40] sm:$0xff]
        %v498 = vld [vmem:[#allocation2 + $0x48] sm:$0xff]
        %v499 = vld [vmem:[#allocation2 + $0x50] sm:$0xff]
        %v500 = vld [vmem:[#allocation2 + $0x58] sm:$0xff]
        %v501 = vld [vmem:[#allocation2 + $0x60] sm:$0xff]
        %v502 = vld [vmem:[#allocation2 + $0x68] sm:$0xff]
        %v503 = vld [vmem:[#allocation2 + $0x70] sm:$0xff]
        %v504 = vld [vmem:[#allocation2 + $0x78] sm:$0xff]
        %v505 = vpack.c.bf16 %v490, %v489
        %v506 = vpack.c.bf16 %v492, %v491
        %v507 = vpack.c.bf16 %v494, %v493
        %v508 = vpack.c.bf16 %v496, %v495
        %v509 = vpack.c.bf16 %v498, %v497
        %v510 = vpack.c.bf16 %v500, %v499
        %v511 = vpack.c.bf16 %v502, %v501
        %v512 = vpack.c.bf16 %v504, %v503
        %v521 = vunpack.c.l.b16 %v505
        %v522 = vunpack.c.h.b16 %v505
        %v523 = vunpack.c.l.b16 %v506
        %v524 = vunpack.c.h.b16 %v506
        %v525 = vunpack.c.l.b16 %v507
        %v526 = vunpack.c.h.b16 %v507
        %v527 = vunpack.c.l.b16 %v508
        %v528 = vunpack.c.h.b16 %v508
        %v529 = vunpack.c.l.b16 %v509
        %v530 = vunpack.c.h.b16 %v509
        %v531 = vunpack.c.l.b16 %v510
        %v532 = vunpack.c.h.b16 %v510
        %v533 = vunpack.c.l.b16 %v511
        %v534 = vunpack.c.h.b16 %v511
        %v535 = vunpack.c.l.b16 %v512
        %v536 = vunpack.c.h.b16 %v512
        %v537 = vpack.c.b16 %v521, %v521
        %v538 = vpack.c.b16 %v522, %v522
        %v539 = vpack.c.b16 %v523, %v523
        %v540 = vpack.c.b16 %v524, %v524
        %v541 = vpack.c.b16 %v525, %v525
        %v542 = vpack.c.b16 %v526, %v526
        %v543 = vpack.c.b16 %v527, %v527
        %v544 = vpack.c.b16 %v528, %v528
        %v545 = vpack.c.b16 %v529, %v529
        %v546 = vpack.c.b16 %v530, %v530
        %v547 = vpack.c.b16 %v531, %v531
        %v548 = vpack.c.b16 %v532, %v532
        %v549 = vpack.c.b16 %v533, %v533
        %v550 = vpack.c.b16 %v534, %v534
        %v551 = vpack.c.b16 %v535, %v535
        %v552 = vpack.c.b16 %v536, %v536
        %569 = vst [vmem:[%s190] sm:$0xf] %v537
        %570 = vst [vmem:[%s190 + $0x4] sm:$0xf] %v538
        %571 = vst [vmem:[%s190 + $0x8] sm:$0xf] %v539
        %572 = vst [vmem:[%s190 + $0xc] sm:$0xf] %v540
        %573 = vst [vmem:[%s190 + $0x10] sm:$0xf] %v541
        %574 = vst [vmem:[%s190 + $0x14] sm:$0xf] %v542
        %575 = vst [vmem:[%s190 + $0x18] sm:$0xf] %v543
        %576 = vst [vmem:[%s190 + $0x1c] sm:$0xf] %v544
        %577 = vst [vmem:[%s190 + $0x20] sm:$0xf] %v545
        %578 = vst [vmem:[%s190 + $0x24] sm:$0xf] %v546
        %579 = vst [vmem:[%s190 + $0x28] sm:$0xf] %v547
        %580 = vst [vmem:[%s190 + $0x2c] sm:$0xf] %v548
        %581 = vst [vmem:[%s190 + $0x30] sm:$0xf] %v549
        %582 = vst [vmem:[%s190 + $0x34] sm:$0xf] %v550
        %583 = vst [vmem:[%s190 + $0x38] sm:$0xf] %v551
        %584 = vst [vmem:[%s190 + $0x3c] sm:$0xf] %v552
      $region36: #{gcn_forward.6} parent=27 // pred_fallthru
        _
      %s585 = smul.u32 16, %s17
      %p586 = scmp.lt.s32.totalorder %s585, 31
      %s587 = scalar_select %p586, %s585, 31
      %s588 = smul.addr %s587, 4
      %s589 = scalar_lea.vmem %s2, %s588
      // Predicated region
      $region37: #{gcn_forward.6} parent=27 // pred_check
        %p590 = pneg %p97
      $region38: #{gcn_forward.6} parent=27 // pred_check_branch
        %592 = sbr.rel (%p590) target = $region40
      $region39: #{gcn_forward.6} parent=27 // pred_region
        %s593 = smul.u32 16, %s17
      $region40: #{gcn_forward.6} parent=27 // pred_fallthru
        _
    $region28: #{gcn_forward.6} parent=5 // pred_fallthru
      _
    %p594 = scmp.le.s32.totalorder 2, %s8
    // Predicated region
    $region41: #{gcn_forward.6} parent=5 // pred_check
      %p595 = pneg %p594
    $region42: #{gcn_forward.6} parent=5 // pred_check_branch
      %597 = sbr.rel (%p595) target = $region44
    $region43: #{gcn_forward.6} parent=5 // pred_region
      %s598 = ssub.s32 %s8, 2
      // Predicated region
      $region45: #{gcn_forward.6} parent=43 // pred_check
        %p599 = pneg %p103
      $region46: #{gcn_forward.6} parent=43 // pred_check_branch
        %601 = sbr.rel (%p599) target = $region48
      $region47: #{gcn_forward.6} parent=43 // pred_region
        %s602 = smul.u32 16, %s19
        %p603 = scmp.lt.s32.totalorder %s602, 31
        %s604 = scalar_select %p603, %s602, 31
        %s605 = smul.addr %s604, 4
        %s606 = scalar_lea.vmem %s2, %s605
      $region48: #{gcn_forward.6} parent=43 // pred_fallthru
        _
    $region44: #{gcn_forward.6} parent=5 // pred_fallthru
      _
  $region6: #{gcn_forward.6} parent=0 // loop_footer
    %s12 = sadd.s32 1, %s8
  $region7: #{gcn_forward.6} parent=0 // loop_footer_branch
    %7 = sbr.rel target = $region3
  $region8: #{gcn_forward.6} parent=0 // loop_exit
    _

// kernel: gcn_forward.4
$region0: #{gcn_forward.4}
  #allocation0 [shape = 'u32[]', space=smem, size = 0x4, offset = 0x4, fixed_abs, tag = 'smem constant byte address 0x4 - core index']
  #allocation1 [shape = 'u32[144,128]{1,0:T(1,128)}', space=vmem, size = 0x12000, scoped, tag = 'internal scratch']
  #allocation2 [shape = 'f32[128,128]{1,0:T(8,128)}', space=vmem, size = 0x10000, scoped, tag = 'scratch operand']
  %s0 = inlined_call_operand.vmem [shape: bf16[256,128], index: 0, kind: input, shape index: {}]
  %s1 = inlined_call_operand.hbm [shape: bf16[128,128], index: 1, kind: input, shape index: {}]
  %s2 = inlined_call_operand.vmem [shape: bf16[256,128], index: 2, kind: output, shape index: {}]
  %s3 = sld [smem:[#allocation0]]
  $region53: #{gcn_forward.4} parent=0
    _
  %s5 = ssub.s32 1, %s3
  %s6 = scalar_select 0, %s5, %s3
  $region1: #{gcn_forward.4} parent=0
    #allocation3 [shape = 'u8[32768]{0}', space=vmem, size = 0x8000, scoped, tag = 'input window, operand 1, single buffered']
    #allocation4 [shape = 's32[2]{0}', space=sflag, size = 0x8, scoped, tag = 'scoped memory for gcn_forward.4']
    %7 = vsyncpa [#allocation4], 0
    loop: start=0, step=1, limit=4
    $region2: #{gcn_forward.4} parent=1 // loop_pre_header
      _
    $region3: #{gcn_forward.4} parent=1 // loop_header
      %s9 = sphi 0, %s13
      %p10 = scmp.ge.s32.totalorder %s9, 4
      %s16 = sphi 0, %s28
      %s17 = sphi 0, %s24
      %s18 = sphi 0, %s16
      %s19 = sphi 0, %s17
      %s20 = sphi 0, %s18
      %s21 = sphi 0, %s19
      %s33 = sphi 0, %s35
      %s36 = sphi 0, %s33
      %s37 = sphi 0, %s36
      %s53 = sphi 0, %s37
      %s59 = sphi 0, %s61
      %s62 = sphi 0, %s59
      %s63 = sphi 0, %s62
      %s79 = sphi 0, %s63
      %s85 = sphi 0, %s87
      %s88 = sphi 0, %s85
      %s89 = sphi 0, %s88
      %s105 = sphi 0, %s89
    $region4: #{gcn_forward.4} parent=1 // loop_header_branch
      %12 = sbr.rel (%p10) target = $region8
    $region5: #{gcn_forward.4} parent=1 // loop_body
      %s14 = ssub.s32 %s9, 1
      %s15 = ssub.s32 %s9, 2
      %s22 = sadd.s32 1, %s17
      %p23 = scmp.ge.s32.totalorder %s22, 1
      %s24 = scalar_select %p23, 0, %s22
      %s25 = sadd.s32 1, %s16
      %s26 = scalar_select %p23, %s25, %s16
      %p27 = scmp.ge.s32.totalorder %s26, 2
      %s28 = scalar_select %p27, 0, %s26
      %s29 = ssub.s32 %s16, %s28
      %s30 = ssub.s32 %s17, %s24
      %s31 = sor.u32 %s29, %s30
      %p32 = scmp.eq.s32.totalorder %s31, 0
      %s34 = sadd.s32 %s33, 1
      %s35 = scalar_select %p32, %s33, %s34
      %p38 = pneg %p32
      %p39 = scmp.eq.s32.totalorder %s9, 1
      %p40 = por %p38, %p39
      %p41 = scmp.ne.s32.totalorder %s33, %s36
      %p42 = scmp.eq.s32.totalorder %s9, 0
      %p43 = por %p41, %p42
      %p44 = scmp.ne.s32.totalorder %s33, %s36
      %p45 = scmp.eq.s32.totalorder %s14, 1
      %p46 = por %p44, %p45
      %p47 = scmp.ne.s32.totalorder %s36, %s37
      %p48 = scmp.eq.s32.totalorder %s14, 0
      %p49 = por %p47, %p48
      %p50 = scmp.ne.s32.totalorder %s36, %s37
      %p51 = scmp.eq.s32.totalorder %s15, 1
      %p52 = por %p50, %p51
      %p54 = scmp.ne.s32.totalorder %s37, %s53
      %p55 = scmp.eq.s32.totalorder %s15, 0
      %p56 = por %p54, %p55
      %s57 = ssub.s32 %s17, %s24
      %p58 = scmp.eq.s32.totalorder %s57, 0
      %s60 = sadd.s32 %s59, 1
      %s61 = scalar_select %p58, %s59, %s60
      %p64 = pneg %p58
      %p65 = scmp.eq.s32.totalorder %s9, 1
      %p66 = por %p64, %p65
      %p67 = scmp.ne.s32.totalorder %s59, %s62
      %p68 = scmp.eq.s32.totalorder %s9, 0
      %p69 = por %p67, %p68
      %p70 = scmp.ne.s32.totalorder %s59, %s62
      %p71 = scmp.eq.s32.totalorder %s14, 1
      %p72 = por %p70, %p71
      %p73 = scmp.ne.s32.totalorder %s62, %s63
      %p74 = scmp.eq.s32.totalorder %s14, 0
      %p75 = por %p73, %p74
      %p76 = scmp.ne.s32.totalorder %s62, %s63
      %p77 = scmp.eq.s32.totalorder %s15, 1
      %p78 = por %p76, %p77
      %p80 = scmp.ne.s32.totalorder %s63, %s79
      %p81 = scmp.eq.s32.totalorder %s15, 0
      %p82 = por %p80, %p81
      %s83 = ssub.s32 %s16, %s28
      %p84 = scmp.eq.s32.totalorder %s83, 0
      %s86 = sadd.s32 %s85, 1
      %s87 = scalar_select %p84, %s85, %s86
      %p90 = pneg %p84
      %p91 = scmp.eq.s32.totalorder %s9, 1
      %p92 = por %p90, %p91
      %p93 = scmp.ne.s32.totalorder %s85, %s88
      %p94 = scmp.eq.s32.totalorder %s9, 0
      %p95 = por %p93, %p94
      %p96 = scmp.ne.s32.totalorder %s85, %s88
      %p97 = scmp.eq.s32.totalorder %s14, 1
      %p98 = por %p96, %p97
      %p99 = scmp.ne.s32.totalorder %s88, %s89
      %p100 = scmp.eq.s32.totalorder %s14, 0
      %p101 = por %p99, %p100
      %p102 = scmp.ne.s32.totalorder %s88, %s89
      %p103 = scmp.eq.s32.totalorder %s15, 1
      %p104 = por %p102, %p103
      %p106 = scmp.ne.s32.totalorder %s89, %s105
      %p107 = scmp.eq.s32.totalorder %s15, 0
      %p108 = por %p106, %p107
      %p109 = scmp.le.s32.totalorder 1, %s9
      %p110 = scmp.lt.s32.totalorder %s9, 3
      %p111 = pnand %p109, %p110
      %p112 = pneg %p111
      // Predicated region
      $region9: #{gcn_forward.4} parent=5 // pred_check
        _
      $region10: #{gcn_forward.4} parent=5 // pred_check_branch
        %114 = sbr.rel (%p111) target = $region12
      $region11: #{gcn_forward.4} parent=5 // pred_region
        %s115 = ssub.s32 %s9, 1
        // Predicated region
        $region13: #{gcn_forward.4} parent=11 // pred_check
          %p116 = pneg %p75
        $region14: #{gcn_forward.4} parent=11 // pred_check_branch
          %118 = sbr.rel (%p116) target = $region16
        $region15: #{gcn_forward.4} parent=11 // pred_region
          %s119 = smul.u32 16, %s19
          %s121 = ssub.s32 1024, 1024
          %122 = vsyncadd [#allocation4], %s121
          %s123 = smul.addr %s119, 64
          %s124 = scalar_lea.hbm %s1, %s123
          %s125 = sshll.u32 [#allocation3], 4
          %s126 = int_to_ptr.vmem [resolvable:$true] %s125
          %131 = dma.hbm_to_vmem [thread:$0]  %s124, 1024, %s126, [#allocation4], 64, 64, 4
        $region16: #{gcn_forward.4} parent=11 // pred_fallthru
          _
      $region12: #{gcn_forward.4} parent=5 // pred_fallthru
        _
      %p132 = scmp.lt.s32.totalorder %s9, 2
      // Predicated region
      $region17: #{gcn_forward.4} parent=5 // pred_check
        %p133 = pneg %p132
      $region18: #{gcn_forward.4} parent=5 // pred_check_branch
        %135 = sbr.rel (%p133) target = $region20
      $region19: #{gcn_forward.4} parent=5 // pred_region
        // Predicated region
        $region21: #{gcn_forward.4} parent=19 // pred_check
          %p136 = pneg %p43
        $region22: #{gcn_forward.4} parent=19 // pred_check_branch
          %138 = sbr.rel (%p136) target = $region24
        $region23: #{gcn_forward.4} parent=19 // pred_region
          %s139 = smul.u32 16, %s16
          %p140 = scmp.lt.s32.totalorder %s139, 31
          %s141 = scalar_select %p140, %s139, 31
          %p142 = scmp.lt.s32.totalorder %s17, 0
          %s143 = scalar_select %p142, %s17, 0
          %s144 = sadd.s32 %s143, %s141
          %s145 = smul.addr %s144, 4
          %s146 = scalar_lea.vmem %s0, %s145
          %s147 = smul.u32 16, %s16
        $region24: #{gcn_forward.4} parent=19 // pred_fallthru
          _
      $region20: #{gcn_forward.4} parent=5 // pred_fallthru
        _
      %p148 = scmp.le.s32.totalorder 1, %s9
      %p149 = scmp.lt.s32.totalorder %s9, 3
      %p150 = pnand %p148, %p149
      %p151 = pneg %p150
      // Predicated region
      $region25: #{gcn_forward.4} parent=5 // pred_check
        _
      $region26: #{gcn_forward.4} parent=5 // pred_check_branch
        %153 = sbr.rel (%p150) target = $region28
      $region27: #{gcn_forward.4} parent=5 // pred_region
        %s154 = ssub.s32 %s9, 1
        // Predicated region
        $region29: #{gcn_forward.4} parent=27 // pred_check
          %p155 = pneg %p75
        $region30: #{gcn_forward.4} parent=27 // pred_check_branch
          %157 = sbr.rel (%p155) target = $region32
        $region31: #{gcn_forward.4} parent=27 // pred_region
          %158 = dma.done [#allocation4], 1024
        $region32: #{gcn_forward.4} parent=27 // pred_fallthru
          _
        %s159 = smul.u32 16, %s18
        %p160 = scmp.lt.s32.totalorder %s159, 31
        %s161 = scalar_select %p160, %s159, 31
        %p162 = scmp.lt.s32.totalorder %s19, 0
        %s163 = scalar_select %p162, %s19, 0
        %s164 = sadd.s32 %s163, %s161
        %s165 = smul.addr %s164, 4
        %s166 = scalar_lea.vmem %s0, %s165
        %p167 = pneg %p49
        %p168 = pneg %p46
        %p169 = pneg %p75
        %p170 = pneg %p72
        %p171 = pneg %p101
        %p172 = pneg %p98
        %s173 = smul.u32 16, %s18
        %p174 = scmp.lt.s32.totalorder %s173, 31
        %s175 = scalar_select %p174, %s173, 31
        %s176 = smul.addr %s175, 4
        %s177 = scalar_lea.vmem %s2, %s176
        %s178 = smul.u32 16, %s18
        %p179 = scmp.lt.s32.totalorder %s178, 31
        %s180 = scalar_select %p179, %s178, 31
        %p181 = scmp.lt.s32.totalorder %s19, 0
        %s182 = scalar_select %p181, %s19, 0
        %s183 = sadd.s32 %s182, %s180
        %s184 = smul.addr %s183, 4
        %s185 = scalar_lea.vmem %s0, %s184
        %s186 = smul.u32 16, %s18
        %s187 = smul.u32 16, %s19
        %s188 = smul.u32 16, %s18
        %p189 = scmp.lt.s32.totalorder %s188, 31
        %s190 = scalar_select %p189, %s188, 31
        %s191 = smul.addr %s190, 4
        %s192 = scalar_lea.vmem %s2, %s191
        %s193 = smul.u32 16, %s18
        %p195 = scmp.eq.s32.totalorder %s19, 0
        // Predicated region
        $region33: #{gcn_forward.4} parent=27 // pred_check
          %p196 = pneg %p195
        $region34: #{gcn_forward.4} parent=27 // pred_check_branch
          %198 = sbr.rel (%p196) target = $region36
        $region35: #{gcn_forward.4} parent=27 // pred_region
          %199 = vst [vmem:[#allocation2] sm:$0xff] 0.0
          %200 = vst [vmem:[#allocation2 + $0x8] sm:$0xff] 0.0
          %201 = vst [vmem:[#allocation2 + $0x10] sm:$0xff] 0.0
          %202 = vst [vmem:[#allocation2 + $0x18] sm:$0xff] 0.0
          %203 = vst [vmem:[#allocation2 + $0x20] sm:$0xff] 0.0
          %204 = vst [vmem:[#allocation2 + $0x28] sm:$0xff] 0.0
          %205 = vst [vmem:[#allocation2 + $0x30] sm:$0xff] 0.0
          %206 = vst [vmem:[#allocation2 + $0x38] sm:$0xff] 0.0
          %207 = vst [vmem:[#allocation2 + $0x40] sm:$0xff] 0.0
          %208 = vst [vmem:[#allocation2 + $0x48] sm:$0xff] 0.0
          %209 = vst [vmem:[#allocation2 + $0x50] sm:$0xff] 0.0
          %210 = vst [vmem:[#allocation2 + $0x58] sm:$0xff] 0.0
          %211 = vst [vmem:[#allocation2 + $0x60] sm:$0xff] 0.0
          %212 = vst [vmem:[#allocation2 + $0x68] sm:$0xff] 0.0
          %213 = vst [vmem:[#allocation2 + $0x70] sm:$0xff] 0.0
          %214 = vst [vmem:[#allocation2 + $0x78] sm:$0xff] 0.0
        $region36: #{gcn_forward.4} parent=27 // pred_fallthru
          _
        %v215 = vld [vmem:[#allocation2] sm:$0xff]
        %v216 = vld [vmem:[#allocation2 + $0x8] sm:$0xff]
        %v217 = vld [vmem:[#allocation2 + $0x10] sm:$0xff]
        %v218 = vld [vmem:[#allocation2 + $0x18] sm:$0xff]
        %v219 = vld [vmem:[#allocation2 + $0x20] sm:$0xff]
        %v220 = vld [vmem:[#allocation2 + $0x28] sm:$0xff]
        %v221 = vld [vmem:[#allocation2 + $0x30] sm:$0xff]
        %v222 = vld [vmem:[#allocation2 + $0x38] sm:$0xff]
        %v223 = vld [vmem:[#allocation2 + $0x40] sm:$0xff]
        %v224 = vld [vmem:[#allocation2 + $0x48] sm:$0xff]
        %v225 = vld [vmem:[#allocation2 + $0x50] sm:$0xff]
        %v226 = vld [vmem:[#allocation2 + $0x58] sm:$0xff]
        %v227 = vld [vmem:[#allocation2 + $0x60] sm:$0xff]
        %v228 = vld [vmem:[#allocation2 + $0x68] sm:$0xff]
        %v229 = vld [vmem:[#allocation2 + $0x70] sm:$0xff]
        %v230 = vld [vmem:[#allocation2 + $0x78] sm:$0xff]
        %v231 = vld [vmem:[%s185] sm:$0xf]
        %v232 = vld [vmem:[%s185 + $0x4] sm:$0xf]
        %v233 = vld [vmem:[%s185 + $0x8] sm:$0xf]
        %v234 = vld [vmem:[%s185 + $0xc] sm:$0xf]
        %v235 = vld [vmem:[%s185 + $0x10] sm:$0xf]
        %v236 = vld [vmem:[%s185 + $0x14] sm:$0xf]
        %v237 = vld [vmem:[%s185 + $0x18] sm:$0xf]
        %v238 = vld [vmem:[%s185 + $0x1c] sm:$0xf]
        %v239 = vld [vmem:[%s185 + $0x20] sm:$0xf]
        %v240 = vld [vmem:[%s185 + $0x24] sm:$0xf]
        %v241 = vld [vmem:[%s185 + $0x28] sm:$0xf]
        %v242 = vld [vmem:[%s185 + $0x2c] sm:$0xf]
        %v243 = vld [vmem:[%s185 + $0x30] sm:$0xf]
        %v244 = vld [vmem:[%s185 + $0x34] sm:$0xf]
        %v245 = vld [vmem:[%s185 + $0x38] sm:$0xf]
        %v246 = vld [vmem:[%s185 + $0x3c] sm:$0xf]
        %v247 = vld [vmem:[#allocation3] sm:$0xf]
        %v248 = vld [vmem:[#allocation3 + $0x4] sm:$0xf]
        %v249 = vld [vmem:[#allocation3 + $0x8] sm:$0xf]
        %v250 = vld [vmem:[#allocation3 + $0xc] sm:$0xf]
        %v251 = vld [vmem:[#allocation3 + $0x10] sm:$0xf]
        %v252 = vld [vmem:[#allocation3 + $0x14] sm:$0xf]
        %v253 = vld [vmem:[#allocation3 + $0x18] sm:$0xf]
        %v254 = vld [vmem:[#allocation3 + $0x1c] sm:$0xf]
        %v255 = vld [vmem:[#allocation3 + $0x20] sm:$0xf]
        %v256 = vld [vmem:[#allocation3 + $0x24] sm:$0xf]
        %v257 = vld [vmem:[#allocation3 + $0x28] sm:$0xf]
        %v258 = vld [vmem:[#allocation3 + $0x2c] sm:$0xf]
        %v259 = vld [vmem:[#allocation3 + $0x30] sm:$0xf]
        %v260 = vld [vmem:[#allocation3 + $0x34] sm:$0xf]
        %v261 = vld [vmem:[#allocation3 + $0x38] sm:$0xf]
        %v262 = vld [vmem:[#allocation3 + $0x3c] sm:$0xf]
        %v279 = vunpack.c.l.b16 %v231
        %v280 = vunpack.c.l.b16 %v232
        %v281 = vunpack.c.l.b16 %v233
        %v282 = vunpack.c.l.b16 %v234
        %v283 = vunpack.c.l.b16 %v235
        %v284 = vunpack.c.l.b16 %v236
        %v285 = vunpack.c.l.b16 %v237
        %v286 = vunpack.c.l.b16 %v238
        %v287 = vunpack.c.l.b16 %v239
        %v288 = vunpack.c.l.b16 %v240
        %v289 = vunpack.c.l.b16 %v241
        %v290 = vunpack.c.l.b16 %v242
        %v291 = vunpack.c.l.b16 %v243
        %v292 = vunpack.c.l.b16 %v244
        %v293 = vunpack.c.l.b16 %v245
        %v294 = vunpack.c.l.b16 %v246
        %v295 = vpack.c.b16 %v280, %v279
        %v296 = vpack.c.b16 %v282, %v281
        %v297 = vpack.c.b16 %v284, %v283
        %v298 = vpack.c.b16 %v286, %v285
        %v299 = vpack.c.b16 %v288, %v287
        %v300 = vpack.c.b16 %v290, %v289
        %v301 = vpack.c.b16 %v292, %v291
        %v302 = vpack.c.b16 %v294, %v293
        %v327 = vunpack.c.l.b16 %v247
        %v328 = vunpack.c.l.b16 %v248
        %v329 = vunpack.c.l.b16 %v249
        %v330 = vunpack.c.l.b16 %v250
        %v331 = vunpack.c.l.b16 %v251
        %v332 = vunpack.c.l.b16 %v252
        %v333 = vunpack.c.l.b16 %v253
        %v334 = vunpack.c.l.b16 %v254
        %v335 = vunpack.c.l.b16 %v255
        %v336 = vunpack.c.l.b16 %v256
        %v337 = vunpack.c.l.b16 %v257
        %v338 = vunpack.c.l.b16 %v258
        %v339 = vunpack.c.l.b16 %v259
        %v340 = vunpack.c.l.b16 %v260
        %v341 = vunpack.c.l.b16 %v261
        %v342 = vunpack.c.l.b16 %v262
        %v343 = vpack.c.b16 %v328, %v327
        %v344 = vpack.c.b16 %v330, %v329
        %v345 = vpack.c.b16 %v332, %v331
        %v346 = vpack.c.b16 %v334, %v333
        %v347 = vpack.c.b16 %v336, %v335
        %v348 = vpack.c.b16 %v338, %v337
        %v349 = vpack.c.b16 %v340, %v339
        %v350 = vpack.c.b16 %v342, %v341
        %359 = vmatprep.subr.bf16.mxu0 0
        %360 = vmatpush1.bf16.msra.mxu0 %v343
        %361 = vmatprep.subr.bf16.mxu0 0
        %362 = vmatpush1.bf16.msra.mxu0 %v344
        %363 = vmatprep.subr.bf16.mxu0 0
        %364 = vmatpush1.bf16.msra.mxu0 %v345
        %365 = vmatprep.subr.bf16.mxu0 0
        %366 = vmatpush1.bf16.msra.mxu0 %v346
        %367 = vmatprep.subr.bf16.mxu0 0
        %368 = vmatpush1.bf16.msra.mxu0 %v347
        %369 = vmatprep.subr.bf16.mxu0 0
        %370 = vmatpush1.bf16.msra.mxu0 %v348
        %371 = vmatprep.subr.bf16.mxu0 0
        %372 = vmatpush1.bf16.msra.mxu0 %v349
        %373 = vmatprep.subr.bf16.mxu0 0
        %374 = vmatpush1.bf16.msra.mxu0 %v350
        %375 = vmatprep.subr.bf16.mxu0 0
        %376 = vmatpush1.bf16.msra.mxu0 0
        %377 = vmatprep.subr.bf16.mxu0 0
        %378 = vmatpush1.bf16.msra.mxu0 0
        %379 = vmatprep.subr.bf16.mxu0 0
        %380 = vmatpush1.bf16.msra.mxu0 0
        %381 = vmatprep.subr.bf16.mxu0 0
        %382 = vmatpush1.bf16.msra.mxu0 0
        %383 = vmatprep.subr.bf16.mxu0 0
        %384 = vmatpush1.bf16.msra.mxu0 0
        %385 = vmatprep.subr.bf16.mxu0 0
        %386 = vmatpush1.bf16.msra.mxu0 0
        %387 = vmatprep.subr.bf16.mxu0 0
        %388 = vmatpush1.bf16.msra.mxu0 0
        %389 = vmatprep.subr.bf16.mxu0 0
        %390 = vmatpush1.bf16.msra.mxu0 0
        %391 = vmatprep.mubr.bf16.mxu0 0
        %392 = vmatmul.mubr.bf16.gmra.mrb[0].mxu0 %v295
        %v393 = vpop.f32.mrb[0].mxu0
        %v394 = vadd.f32 0.0, %v393
        %v395 = vpop.f32.mrb[0].mxu0
        %v396 = vpop.f32.mrb[0].mxu0
        %v397 = vadd.f32 0.0, %v396
        %v398 = vpop.f32.mrb[0].mxu0
        %399 = vmatprep.mubr.bf16.mxu0 0
        %400 = vmatmul.mubr.bf16.gmra.mrb[0].mxu0 %v296
        %v401 = vpop.f32.mrb[0].mxu0
        %v402 = vadd.f32 0.0, %v401
        %v403 = vpop.f32.mrb[0].mxu0
        %v404 = vpop.f32.mrb[0].mxu0
        %v405 = vadd.f32 0.0, %v404
        %v406 = vpop.f32.mrb[0].mxu0
        %407 = vmatprep.mubr.bf16.mxu0 0
        %408 = vmatmul.mubr.bf16.gmra.mrb[0].mxu0 %v297
        %v409 = vpop.f32.mrb[0].mxu0
        %v410 = vadd.f32 0.0, %v409
        %v411 = vpop.f32.mrb[0].mxu0
        %v412 = vpop.f32.mrb[0].mxu0
        %v413 = vadd.f32 0.0, %v412
        %v414 = vpop.f32.mrb[0].mxu0
        %415 = vmatprep.mubr.bf16.mxu0 0
        %416 = vmatmul.mubr.bf16.gmra.mrb[0].mxu0 %v298
        %v417 = vpop.f32.mrb[0].mxu0
        %v418 = vadd.f32 0.0, %v417
        %v419 = vpop.f32.mrb[0].mxu0
        %v420 = vpop.f32.mrb[0].mxu0
        %v421 = vadd.f32 0.0, %v420
        %v422 = vpop.f32.mrb[0].mxu0
        %423 = vmatprep.mubr.bf16.mxu0 0
        %424 = vmatmul.mubr.bf16.gmra.mrb[0].mxu0 %v299
        %v425 = vpop.f32.mrb[0].mxu0
        %v426 = vadd.f32 0.0, %v425
        %v427 = vpop.f32.mrb[0].mxu0
        %v428 = vpop.f32.mrb[0].mxu0
        %v429 = vadd.f32 0.0, %v428
        %v430 = vpop.f32.mrb[0].mxu0
        %431 = vmatprep.mubr.bf16.mxu0 0
        %432 = vmatmul.mubr.bf16.gmra.mrb[0].mxu0 %v300
        %v433 = vpop.f32.mrb[0].mxu0
        %v434 = vadd.f32 0.0, %v433
        %v435 = vpop.f32.mrb[0].mxu0
        %v436 = vpop.f32.mrb[0].mxu0
        %v437 = vadd.f32 0.0, %v436
        %v438 = vpop.f32.mrb[0].mxu0
        %439 = vmatprep.mubr.bf16.mxu0 0
        %440 = vmatmul.mubr.bf16.gmra.mrb[0].mxu0 %v301
        %v441 = vpop.f32.mrb[0].mxu0
        %v442 = vadd.f32 0.0, %v441
        %v443 = vpop.f32.mrb[0].mxu0
        %v444 = vpop.f32.mrb[0].mxu0
        %v445 = vadd.f32 0.0, %v444
        %v446 = vpop.f32.mrb[0].mxu0
        %447 = vmatprep.mubr.bf16.mxu0 0
        %448 = vmatmul.mubr.bf16.gmra.mrb[0].mxu0 %v302
        %v449 = vpop.f32.mrb[0].mxu0
        %v450 = vadd.f32 0.0, %v449
        %v451 = vpop.f32.mrb[0].mxu0
        %v452 = vpop.f32.mrb[0].mxu0
        %v453 = vadd.f32 0.0, %v452
        %v454 = vpop.f32.mrb[0].mxu0
        %455 = vdwg.mxu0
        %v456 = vadd.f32 %v215, %v394
        %v457 = vadd.f32 %v216, %v397
        %v458 = vadd.f32 %v217, %v402
        %v459 = vadd.f32 %v218, %v405
        %v460 = vadd.f32 %v219, %v410
        %v461 = vadd.f32 %v220, %v413
        %v462 = vadd.f32 %v221, %v418
        %v463 = vadd.f32 %v222, %v421
        %v464 = vadd.f32 %v223, %v426
        %v465 = vadd.f32 %v224, %v429
        %v466 = vadd.f32 %v225, %v434
        %v467 = vadd.f32 %v226, %v437
        %v468 = vadd.f32 %v227, %v442
        %v469 = vadd.f32 %v228, %v445
        %v470 = vadd.f32 %v229, %v450
        %v471 = vadd.f32 %v230, %v453
        %472 = vst [vmem:[#allocation2] sm:$0xff] %v456
        %473 = vst [vmem:[#allocation2 + $0x8] sm:$0xff] %v457
        %474 = vst [vmem:[#allocation2 + $0x10] sm:$0xff] %v458
        %475 = vst [vmem:[#allocation2 + $0x18] sm:$0xff] %v459
        %476 = vst [vmem:[#allocation2 + $0x20] sm:$0xff] %v460
        %477 = vst [vmem:[#allocation2 + $0x28] sm:$0xff] %v461
        %478 = vst [vmem:[#allocation2 + $0x30] sm:$0xff] %v462
        %479 = vst [vmem:[#allocation2 + $0x38] sm:$0xff] %v463
        %480 = vst [vmem:[#allocation2 + $0x40] sm:$0xff] %v464
        %481 = vst [vmem:[#allocation2 + $0x48] sm:$0xff] %v465
        %482 = vst [vmem:[#allocation2 + $0x50] sm:$0xff] %v466
        %483 = vst [vmem:[#allocation2 + $0x58] sm:$0xff] %v467
        %484 = vst [vmem:[#allocation2 + $0x60] sm:$0xff] %v468
        %485 = vst [vmem:[#allocation2 + $0x68] sm:$0xff] %v469
        %486 = vst [vmem:[#allocation2 + $0x70] sm:$0xff] %v470
        %487 = vst [vmem:[#allocation2 + $0x78] sm:$0xff] %v471
        // Predicated region
        $region37: #{gcn_forward.4} parent=27 // pred_check
          %p488 = pneg %p195
        $region38: #{gcn_forward.4} parent=27 // pred_check_branch
          %490 = sbr.rel (%p488) target = $region40
        $region39: #{gcn_forward.4} parent=27 // pred_region
          %v491 = vld [vmem:[#allocation2] sm:$0xff]
          %v492 = vld [vmem:[#allocation2 + $0x8] sm:$0xff]
          %v493 = vld [vmem:[#allocation2 + $0x10] sm:$0xff]
          %v494 = vld [vmem:[#allocation2 + $0x18] sm:$0xff]
          %v495 = vld [vmem:[#allocation2 + $0x20] sm:$0xff]
          %v496 = vld [vmem:[#allocation2 + $0x28] sm:$0xff]
          %v497 = vld [vmem:[#allocation2 + $0x30] sm:$0xff]
          %v498 = vld [vmem:[#allocation2 + $0x38] sm:$0xff]
          %v499 = vld [vmem:[#allocation2 + $0x40] sm:$0xff]
          %v500 = vld [vmem:[#allocation2 + $0x48] sm:$0xff]
          %v501 = vld [vmem:[#allocation2 + $0x50] sm:$0xff]
          %v502 = vld [vmem:[#allocation2 + $0x58] sm:$0xff]
          %v503 = vld [vmem:[#allocation2 + $0x60] sm:$0xff]
          %v504 = vld [vmem:[#allocation2 + $0x68] sm:$0xff]
          %v505 = vld [vmem:[#allocation2 + $0x70] sm:$0xff]
          %v506 = vld [vmem:[#allocation2 + $0x78] sm:$0xff]
          %v507 = vpack.c.bf16 %v492, %v491
          %v508 = vpack.c.bf16 %v494, %v493
          %v509 = vpack.c.bf16 %v496, %v495
          %v510 = vpack.c.bf16 %v498, %v497
          %v511 = vpack.c.bf16 %v500, %v499
          %v512 = vpack.c.bf16 %v502, %v501
          %v513 = vpack.c.bf16 %v504, %v503
          %v514 = vpack.c.bf16 %v506, %v505
          %v523 = vunpack.c.l.b16 %v507
          %v524 = vunpack.c.h.b16 %v507
          %v525 = vunpack.c.l.b16 %v508
          %v526 = vunpack.c.h.b16 %v508
          %v527 = vunpack.c.l.b16 %v509
          %v528 = vunpack.c.h.b16 %v509
          %v529 = vunpack.c.l.b16 %v510
          %v530 = vunpack.c.h.b16 %v510
          %v531 = vunpack.c.l.b16 %v511
          %v532 = vunpack.c.h.b16 %v511
          %v533 = vunpack.c.l.b16 %v512
          %v534 = vunpack.c.h.b16 %v512
          %v535 = vunpack.c.l.b16 %v513
          %v536 = vunpack.c.h.b16 %v513
          %v537 = vunpack.c.l.b16 %v514
          %v538 = vunpack.c.h.b16 %v514
          %v539 = vpack.c.b16 %v523, %v523
          %v540 = vpack.c.b16 %v524, %v524
          %v541 = vpack.c.b16 %v525, %v525
          %v542 = vpack.c.b16 %v526, %v526
          %v543 = vpack.c.b16 %v527, %v527
          %v544 = vpack.c.b16 %v528, %v528
          %v545 = vpack.c.b16 %v529, %v529
          %v546 = vpack.c.b16 %v530, %v530
          %v547 = vpack.c.b16 %v531, %v531
          %v548 = vpack.c.b16 %v532, %v532
          %v549 = vpack.c.b16 %v533, %v533
          %v550 = vpack.c.b16 %v534, %v534
          %v551 = vpack.c.b16 %v535, %v535
          %v552 = vpack.c.b16 %v536, %v536
          %v553 = vpack.c.b16 %v537, %v537
          %v554 = vpack.c.b16 %v538, %v538
          %571 = vst [vmem:[%s192] sm:$0xf] %v539
          %572 = vst [vmem:[%s192 + $0x4] sm:$0xf] %v540
          %573 = vst [vmem:[%s192 + $0x8] sm:$0xf] %v541
          %574 = vst [vmem:[%s192 + $0xc] sm:$0xf] %v542
          %575 = vst [vmem:[%s192 + $0x10] sm:$0xf] %v543
          %576 = vst [vmem:[%s192 + $0x14] sm:$0xf] %v544
          %577 = vst [vmem:[%s192 + $0x18] sm:$0xf] %v545
          %578 = vst [vmem:[%s192 + $0x1c] sm:$0xf] %v546
          %579 = vst [vmem:[%s192 + $0x20] sm:$0xf] %v547
          %580 = vst [vmem:[%s192 + $0x24] sm:$0xf] %v548
          %581 = vst [vmem:[%s192 + $0x28] sm:$0xf] %v549
          %582 = vst [vmem:[%s192 + $0x2c] sm:$0xf] %v550
          %583 = vst [vmem:[%s192 + $0x30] sm:$0xf] %v551
          %584 = vst [vmem:[%s192 + $0x34] sm:$0xf] %v552
          %585 = vst [vmem:[%s192 + $0x38] sm:$0xf] %v553
          %586 = vst [vmem:[%s192 + $0x3c] sm:$0xf] %v554
        $region40: #{gcn_forward.4} parent=27 // pred_fallthru
          _
        %s587 = smul.u32 16, %s18
        %p588 = scmp.lt.s32.totalorder %s587, 31
        %s589 = scalar_select %p588, %s587, 31
        %s590 = smul.addr %s589, 4
        %s591 = scalar_lea.vmem %s2, %s590
        // Predicated region
        $region41: #{gcn_forward.4} parent=27 // pred_check
          %p592 = pneg %p98
        $region42: #{gcn_forward.4} parent=27 // pred_check_branch
          %594 = sbr.rel (%p592) target = $region44
        $region43: #{gcn_forward.4} parent=27 // pred_region
          %s595 = smul.u32 16, %s18
        $region44: #{gcn_forward.4} parent=27 // pred_fallthru
          _
      $region28: #{gcn_forward.4} parent=5 // pred_fallthru
        _
      %p596 = scmp.le.s32.totalorder 2, %s9
      // Predicated region
      $region45: #{gcn_forward.4} parent=5 // pred_check
        %p597 = pneg %p596
      $region46: #{gcn_forward.4} parent=5 // pred_check_branch
        %599 = sbr.rel (%p597) target = $region48
      $region47: #{gcn_forward.4} parent=5 // pred_region
        %s600 = ssub.s32 %s9, 2
        // Predicated region
        $region49: #{gcn_forward.4} parent=47 // pred_check
          %p601 = pneg %p104
        $region50: #{gcn_forward.4} parent=47 // pred_check_branch
          %603 = sbr.rel (%p601) target = $region52
        $region51: #{gcn_forward.4} parent=47 // pred_region
          %s604 = smul.u32 16, %s20
          %p605 = scmp.lt.s32.totalorder %s604, 31
          %s606 = scalar_select %p605, %s604, 31
          %s607 = smul.addr %s606, 4
          %s608 = scalar_lea.vmem %s2, %s607
        $region52: #{gcn_forward.4} parent=47 // pred_fallthru
          _
      $region48: #{gcn_forward.4} parent=5 // pred_fallthru
        _
    $region6: #{gcn_forward.4} parent=1 // loop_footer
      %s13 = sadd.s32 1, %s9
    $region7: #{gcn_forward.4} parent=1 // loop_footer_branch
      %8 = sbr.rel target = $region3
    $region8: #{gcn_forward.4} parent=1 // loop_exit
      _
    %609 = vsyncpa [#allocation4], 1
    %s610 = scalar_lea.sflag [#allocation4], 1
    %611 = vsyncpa %s610, 1

// kernel: gcn_forward.5
$region0: #{gcn_forward.5}
  #allocation0 [shape = 'u32[]', space=smem, size = 0x4, offset = 0x4, fixed_abs, tag = 'smem constant byte address 0x4 - core index']
  #allocation1 [shape = 'u32[144,128]{1,0:T(1,128)}', space=vmem, size = 0x12000, scoped, tag = 'internal scratch']
  %s0 = inlined_call_operand.vmem [shape: bf16[256,256], index: 0, kind: input, shape index: {}]
  %s1 = inlined_call_operand.vmem [shape: bf16[256,128], index: 1, kind: input, shape index: {}]
  %s2 = inlined_call_operand.vmem [shape: f32[1,128], index: 2, kind: input, shape index: {}]
  %s3 = inlined_call_operand.vmem [shape: bf16[256,128], index: 3, kind: output, shape index: {}]
  %s4 = sld [smem:[#allocation0]]
  $region45: #{gcn_forward.5} parent=0
    _
  %s6 = ssub.s32 1, %s4
  %s7 = scalar_select 0, %s6, %s4
  loop: start=0, step=1, limit=4
  $region2: #{gcn_forward.5} parent=0 // loop_pre_header
    _
  $region3: #{gcn_forward.5} parent=0 // loop_header
    %s9 = sphi 0, %s13
    %p10 = scmp.ge.s32.totalorder %s9, 4
    %s19 = sphi 0, %s21
    %s22 = sphi 0, %s19
    %s23 = sphi 0, %s22
    %s39 = sphi 0, %s23
    %s43 = sphi 0, %s43
    %s45 = sphi 0, %s43
    %s46 = sphi 0, %s45
    %s60 = sphi 0, %s46
    %s64 = sphi 0, %s64
    %s66 = sphi 0, %s64
    %s67 = sphi 0, %s66
    %s81 = sphi 0, %s67
    %s87 = sphi 0, %s89
    %s90 = sphi 0, %s87
    %s91 = sphi 0, %s90
    %s107 = sphi 0, %s91
  $region4: #{gcn_forward.5} parent=0 // loop_header_branch
    %12 = sbr.rel (%p10) target = $region8
  $region5: #{gcn_forward.5} parent=0 // loop_body
    %s14 = ssub.s32 %s9, 1
    %s15 = ssub.s32 %s9, 2
    %s16 = sadd.s32 %s9, 1
    %s17 = ssub.s32 %s9, %s16
    %p18 = scmp.eq.s32.totalorder %s17, 0
    %s20 = sadd.s32 %s19, 1
    %s21 = scalar_select %p18, %s19, %s20
    %p24 = pneg %p18
    %p25 = scmp.eq.s32.totalorder %s9, 1
    %p26 = por %p24, %p25
    %p27 = scmp.ne.s32.totalorder %s19, %s22
    %p28 = scmp.eq.s32.totalorder %s9, 0
    %p29 = por %p27, %p28
    %p30 = scmp.ne.s32.totalorder %s19, %s22
    %p31 = scmp.eq.s32.totalorder %s14, 1
    %p32 = por %p30, %p31
    %p33 = scmp.ne.s32.totalorder %s22, %s23
    %p34 = scmp.eq.s32.totalorder %s14, 0
    %p35 = por %p33, %p34
    %p36 = scmp.ne.s32.totalorder %s22, %s23
    %p37 = scmp.eq.s32.totalorder %s15, 1
    %p38 = por %p36, %p37
    %p40 = scmp.ne.s32.totalorder %s23, %s39
    %p41 = scmp.eq.s32.totalorder %s15, 0
    %p42 = por %p40, %p41
    %s44 = sadd.s32 %s43, 1
    %p47 = scmp.eq.s32.totalorder %s9, 1
    %p48 = scmp.ne.s32.totalorder %s43, %s45
    %p49 = scmp.eq.s32.totalorder %s9, 0
    %p50 = por %p48, %p49
    %p51 = scmp.ne.s32.totalorder %s43, %s45
    %p52 = scmp.eq.s32.totalorder %s14, 1
    %p53 = por %p51, %p52
    %p54 = scmp.ne.s32.totalorder %s45, %s46
    %p55 = scmp.eq.s32.totalorder %s14, 0
    %p56 = por %p54, %p55
    %p57 = scmp.ne.s32.totalorder %s45, %s46
    %p58 = scmp.eq.s32.totalorder %s15, 1
    %p59 = por %p57, %p58
    %p61 = scmp.ne.s32.totalorder %s46, %s60
    %p62 = scmp.eq.s32.totalorder %s15, 0
    %p63 = por %p61, %p62
    %s65 = sadd.s32 %s64, 1
    %p68 = scmp.eq.s32.totalorder %s9, 1
    %p69 = scmp.ne.s32.totalorder %s64, %s66
    %p70 = scmp.eq.s32.totalorder %s9, 0
    %p71 = por %p69, %p70
    %p72 = scmp.ne.s32.totalorder %s64, %s66
    %p73 = scmp.eq.s32.totalorder %s14, 1
    %p74 = por %p72, %p73
    %p75 = scmp.ne.s32.totalorder %s66, %s67
    %p76 = scmp.eq.s32.totalorder %s14, 0
    %p77 = por %p75, %p76
    %p78 = scmp.ne.s32.totalorder %s66, %s67
    %p79 = scmp.eq.s32.totalorder %s15, 1
    %p80 = por %p78, %p79
    %p82 = scmp.ne.s32.totalorder %s67, %s81
    %p83 = scmp.eq.s32.totalorder %s15, 0
    %p84 = por %p82, %p83
    %s85 = ssub.s32 %s9, %s16
    %p86 = scmp.eq.s32.totalorder %s85, 0
    %s88 = sadd.s32 %s87, 1
    %s89 = scalar_select %p86, %s87, %s88
    %p92 = pneg %p86
    %p93 = scmp.eq.s32.totalorder %s9, 1
    %p94 = por %p92, %p93
    %p95 = scmp.ne.s32.totalorder %s87, %s90
    %p96 = scmp.eq.s32.totalorder %s9, 0
    %p97 = por %p95, %p96
    %p98 = scmp.ne.s32.totalorder %s87, %s90
    %p99 = scmp.eq.s32.totalorder %s14, 1
    %p100 = por %p98, %p99
    %p101 = scmp.ne.s32.totalorder %s90, %s91
    %p102 = scmp.eq.s32.totalorder %s14, 0
    %p103 = por %p101, %p102
    %p104 = scmp.ne.s32.totalorder %s90, %s91
    %p105 = scmp.eq.s32.totalorder %s15, 1
    %p106 = por %p104, %p105
    %p108 = scmp.ne.s32.totalorder %s91, %s107
    %p109 = scmp.eq.s32.totalorder %s15, 0
    %p110 = por %p108, %p109
    %p111 = scmp.le.s32.totalorder 1, %s9
    %p112 = scmp.lt.s32.totalorder %s9, 3
    %p113 = pnand %p111, %p112
    %p114 = pneg %p113
    // Predicated region
    $region9: #{gcn_forward.5} parent=5 // pred_check
      _
    $region10: #{gcn_forward.5} parent=5 // pred_check_branch
      %116 = sbr.rel (%p113) target = $region12
    $region11: #{gcn_forward.5} parent=5 // pred_region
      %s117 = ssub.s32 %s9, 1
      // Predicated region
      $region13: #{gcn_forward.5} parent=11 // pred_check
        %p118 = pneg %p56
      $region14: #{gcn_forward.5} parent=11 // pred_check_branch
        %120 = sbr.rel (%p118) target = $region16
      $region15: #{gcn_forward.5} parent=11 // pred_region
        _
      $region16: #{gcn_forward.5} parent=11 // pred_fallthru
        _
      // Predicated region
      $region17: #{gcn_forward.5} parent=11 // pred_check
        %p121 = pneg %p77
      $region18: #{gcn_forward.5} parent=11 // pred_check_branch
        %123 = sbr.rel (%p121) target = $region20
      $region19: #{gcn_forward.5} parent=11 // pred_region
        _
      $region20: #{gcn_forward.5} parent=11 // pred_fallthru
        _
    $region12: #{gcn_forward.5} parent=5 // pred_fallthru
      _
    %p124 = scmp.lt.s32.totalorder %s9, 2
    // Predicated region
    $region21: #{gcn_forward.5} parent=5 // pred_check
      %p125 = pneg %p124
    $region22: #{gcn_forward.5} parent=5 // pred_check_branch
      %127 = sbr.rel (%p125) target = $region24
    $region23: #{gcn_forward.5} parent=5 // pred_region
      // Predicated region
      $region25: #{gcn_forward.5} parent=23 // pred_check
        %p128 = pneg %p29
      $region26: #{gcn_forward.5} parent=23 // pred_check_branch
        %130 = sbr.rel (%p128) target = $region28
      $region27: #{gcn_forward.5} parent=23 // pred_region
        %s131 = smul.u32 16, %s9
        %p132 = scmp.lt.s32.totalorder %s131, 31
        %s133 = scalar_select %p132, %s131, 31
        %s134 = smul.addr %s133, 2
        %s135 = smul.addr %s134, 4
        %s136 = scalar_lea.vmem %s0, %s135
        %s137 = smul.u32 16, %s9
      $region28: #{gcn_forward.5} parent=23 // pred_fallthru
        _
    $region24: #{gcn_forward.5} parent=5 // pred_fallthru
      _
    %p138 = scmp.le.s32.totalorder 1, %s9
    %p139 = scmp.lt.s32.totalorder %s9, 3
    %p140 = pnand %p138, %p139
    %p141 = pneg %p140
    // Predicated region
    $region29: #{gcn_forward.5} parent=5 // pred_check
      _
    $region30: #{gcn_forward.5} parent=5 // pred_check_branch
      %143 = sbr.rel (%p140) target = $region32
    $region31: #{gcn_forward.5} parent=5 // pred_region
      %s144 = ssub.s32 %s9, 1
      %s145 = smul.u32 16, %s14
      %p146 = scmp.lt.s32.totalorder %s145, 31
      %s147 = scalar_select %p146, %s145, 31
      %s148 = smul.addr %s147, 2
      %s149 = smul.addr %s148, 4
      %s150 = scalar_lea.vmem %s0, %s149
      %p151 = pneg %p35
      %p152 = pneg %p32
      %p153 = pneg %p56
      %p154 = pneg %p53
      %p155 = pneg %p77
      %p156 = pneg %p74
      %p157 = pneg %p103
      %p158 = pneg %p100
      %s159 = smul.u32 16, %s14
      %p160 = scmp.lt.s32.totalorder %s159, 31
      %s161 = scalar_select %p160, %s159, 31
      %s162 = smul.addr %s161, 4
      %s163 = scalar_lea.vmem %s3, %s162
      %s164 = smul.u32 16, %s14
      %p165 = scmp.lt.s32.totalorder %s164, 31
      %s166 = scalar_select %p165, %s164, 31
      %s167 = smul.addr %s166, 2
      %s168 = smul.addr %s167, 4
      %s169 = scalar_lea.vmem %s0, %s168
      %s170 = smul.u32 16, %s14
      %s171 = smul.u32 16, %s14
      %p172 = scmp.lt.s32.totalorder %s171, 31
      %s173 = scalar_select %p172, %s171, 31
      %s174 = smul.addr %s173, 4
      %s175 = scalar_lea.vmem %s3, %s174
      %s176 = smul.u32 16, %s14
      %v178 = vld [vmem:[%s169] sm:$0xff]
      %v179 = vld [vmem:[%s169 + $0x8] sm:$0xff]
      %v180 = vld [vmem:[%s169 + $0x10] sm:$0xff]
      %v181 = vld [vmem:[%s169 + $0x18] sm:$0xff]
      %v182 = vld [vmem:[%s169 + $0x20] sm:$0xff]
      %v183 = vld [vmem:[%s169 + $0x28] sm:$0xff]
      %v184 = vld [vmem:[%s169 + $0x30] sm:$0xff]
      %v185 = vld [vmem:[%s169 + $0x38] sm:$0xff]
      %v186 = vld [vmem:[%s169 + $0x40] sm:$0xff]
      %v187 = vld [vmem:[%s169 + $0x48] sm:$0xff]
      %v188 = vld [vmem:[%s169 + $0x50] sm:$0xff]
      %v189 = vld [vmem:[%s169 + $0x58] sm:$0xff]
      %v190 = vld [vmem:[%s169 + $0x60] sm:$0xff]
      %v191 = vld [vmem:[%s169 + $0x68] sm:$0xff]
      %v192 = vld [vmem:[%s169 + $0x70] sm:$0xff]
      %v193 = vld [vmem:[%s169 + $0x78] sm:$0xff]
      %v194 = vld [vmem:[%s1] sm:$0xf]
      %v195 = vld [vmem:[%s1 + $0x4] sm:$0xf]
      %v196 = vld [vmem:[%s1 + $0x8] sm:$0xf]
      %v197 = vld [vmem:[%s1 + $0xc] sm:$0xf]
      %v198 = vld [vmem:[%s1 + $0x10] sm:$0xf]
      %v199 = vld [vmem:[%s1 + $0x14] sm:$0xf]
      %v200 = vld [vmem:[%s1 + $0x18] sm:$0xf]
      %v201 = vld [vmem:[%s1 + $0x1c] sm:$0xf]
      %v202 = vld [vmem:[%s1 + $0x20] sm:$0xf]
      %v203 = vld [vmem:[%s1 + $0x24] sm:$0xf]
      %v204 = vld [vmem:[%s1 + $0x28] sm:$0xf]
      %v205 = vld [vmem:[%s1 + $0x2c] sm:$0xf]
      %v206 = vld [vmem:[%s1 + $0x30] sm:$0xf]
      %v207 = vld [vmem:[%s1 + $0x34] sm:$0xf]
      %v208 = vld [vmem:[%s1 + $0x38] sm:$0xf]
      %v209 = vld [vmem:[%s1 + $0x3c] sm:$0xf]
      %v210 = vld [vmem:[%s1 + $0x40] sm:$0xf]
      %v211 = vld [vmem:[%s1 + $0x44] sm:$0xf]
      %v212 = vld [vmem:[%s1 + $0x48] sm:$0xf]
      %v213 = vld [vmem:[%s1 + $0x4c] sm:$0xf]
      %v214 = vld [vmem:[%s1 + $0x50] sm:$0xf]
      %v215 = vld [vmem:[%s1 + $0x54] sm:$0xf]
      %v216 = vld [vmem:[%s1 + $0x58] sm:$0xf]
      %v217 = vld [vmem:[%s1 + $0x5c] sm:$0xf]
      %v218 = vld [vmem:[%s1 + $0x60] sm:$0xf]
      %v219 = vld [vmem:[%s1 + $0x64] sm:$0xf]
      %v220 = vld [vmem:[%s1 + $0x68] sm:$0xf]
      %v221 = vld [vmem:[%s1 + $0x6c] sm:$0xf]
      %v222 = vld [vmem:[%s1 + $0x70] sm:$0xf]
      %v223 = vld [vmem:[%s1 + $0x74] sm:$0xf]
      %v224 = vld [vmem:[%s1 + $0x78] sm:$0xf]
      %v225 = vld [vmem:[%s1 + $0x7c] sm:$0xf]
      %s226 = smul.u32 %s14, 128
      %v227 = vlaneseq
      %v228 = vshrl.u32 %v227, 7
      %v229 = vadd.s32 %v228, 8
      %v230 = vadd.s32 %v228, 16
      %v231 = vadd.s32 %v228, 24
      %v232 = vadd.s32 %v228, 32
      %v233 = vadd.s32 %v228, 40
      %v234 = vadd.s32 %v228, 48
      %v235 = vadd.s32 %v228, 56
      %v236 = vadd.s32 %v228, 64
      %v237 = vadd.s32 %v228, 72
      %v238 = vadd.s32 %v228, 80
      %v239 = vadd.s32 %v228, 88
      %v240 = vadd.s32 %v228, 96
      %v241 = vadd.s32 %v228, 104
      %v242 = vadd.s32 %v228, 112
      %v243 = vadd.s32 %v228, 120
      %v244 = vstv %s226
      %v245 = vadd.s32 %v244, %v228
      %v246 = vadd.s32 %v244, %v229
      %v247 = vadd.s32 %v244, %v230
      %v248 = vadd.s32 %v244, %v231
      %v249 = vadd.s32 %v244, %v232
      %v250 = vadd.s32 %v244, %v233
      %v251 = vadd.s32 %v244, %v234
      %v252 = vadd.s32 %v244, %v235
      %v253 = vadd.s32 %v244, %v236
      %v254 = vadd.s32 %v244, %v237
      %v255 = vadd.s32 %v244, %v238
      %v256 = vadd.s32 %v244, %v239
      %v257 = vadd.s32 %v244, %v240
      %v258 = vadd.s32 %v244, %v241
      %v259 = vadd.s32 %v244, %v242
      %v260 = vadd.s32 %v244, %v243
      %vm261 = vcmp.lt.s32.totalorder %v245, 16
      %vm262 = vcmp.lt.s32.totalorder %v246, 16
      %vm263 = vcmp.lt.s32.totalorder %v247, 16
      %vm264 = vcmp.lt.s32.totalorder %v248, 16
      %vm265 = vcmp.lt.s32.totalorder %v249, 16
      %vm266 = vcmp.lt.s32.totalorder %v250, 16
      %vm267 = vcmp.lt.s32.totalorder %v251, 16
      %vm268 = vcmp.lt.s32.totalorder %v252, 16
      %vm269 = vcmp.lt.s32.totalorder %v253, 16
      %vm270 = vcmp.lt.s32.totalorder %v254, 16
      %vm271 = vcmp.lt.s32.totalorder %v255, 16
      %vm272 = vcmp.lt.s32.totalorder %v256, 16
      %vm273 = vcmp.lt.s32.totalorder %v257, 16
      %vm274 = vcmp.lt.s32.totalorder %v258, 16
      %vm275 = vcmp.lt.s32.totalorder %v259, 16
      %vm276 = vcmp.lt.s32.totalorder %v260, 16
      %v277 = vld [vmem:[%s2] sm:$0x1]
      %v278 = vsel %vm261, 1, 0
      %v279 = vsel %vm262, 1, 0
      %v280 = vsel %vm263, 1, 0
      %v281 = vsel %vm264, 1, 0
      %v282 = vsel %vm265, 1, 0
      %v283 = vsel %vm266, 1, 0
      %v284 = vsel %vm267, 1, 0
      %v285 = vsel %vm268, 1, 0
      %v286 = vsel %vm269, 1, 0
      %v287 = vsel %vm270, 1, 0
      %v288 = vsel %vm271, 1, 0
      %v289 = vsel %vm272, 1, 0
      %v290 = vsel %vm273, 1, 0
      %v291 = vsel %vm274, 1, 0
      %v292 = vsel %vm275, 1, 0
      %v293 = vsel %vm276, 1, 0
      %vm294 = vcmp.eq.s32.totalorder %v278, 1
      %vm295 = vcmp.eq.s32.totalorder %v279, 1
      %vm296 = vcmp.eq.s32.totalorder %v280, 1
      %vm297 = vcmp.eq.s32.totalorder %v281, 1
      %vm298 = vcmp.eq.s32.totalorder %v282, 1
      %vm299 = vcmp.eq.s32.totalorder %v283, 1
      %vm300 = vcmp.eq.s32.totalorder %v284, 1
      %vm301 = vcmp.eq.s32.totalorder %v285, 1
      %vm302 = vcmp.eq.s32.totalorder %v286, 1
      %vm303 = vcmp.eq.s32.totalorder %v287, 1
      %vm304 = vcmp.eq.s32.totalorder %v288, 1
      %vm305 = vcmp.eq.s32.totalorder %v289, 1
      %vm306 = vcmp.eq.s32.totalorder %v290, 1
      %vm307 = vcmp.eq.s32.totalorder %v291, 1
      %vm308 = vcmp.eq.s32.totalorder %v292, 1
      %vm309 = vcmp.eq.s32.totalorder %v293, 1
      %v311 = vlaneseq
      %v312 = vshrl.u32 %v311, 7
      %v313 = vsub.s32 0, %v312
      %v314 = vrot.slane %v277, %v313
      %v316 = vsel %vm294, %v314, 0.0
      %v317 = vsel %vm295, %v314, 0.0
      %v318 = vsel %vm296, %v314, 0.0
      %v319 = vsel %vm297, %v314, 0.0
      %v320 = vsel %vm298, %v314, 0.0
      %v321 = vsel %vm299, %v314, 0.0
      %v322 = vsel %vm300, %v314, 0.0
      %v323 = vsel %vm301, %v314, 0.0
      %v324 = vsel %vm302, %v314, 0.0
      %v325 = vsel %vm303, %v314, 0.0
      %v326 = vsel %vm304, %v314, 0.0
      %v327 = vsel %vm305, %v314, 0.0
      %v328 = vsel %vm306, %v314, 0.0
      %v329 = vsel %vm307, %v314, 0.0
      %v330 = vsel %vm308, %v314, 0.0
      %v331 = vsel %vm309, %v314, 0.0
      %v348 = vunpack.c.l.b16 %v178
      %v349 = vunpack.c.h.b16 %v178
      %v350 = vunpack.c.l.b16 %v179
      %v351 = vunpack.c.h.b16 %v179
      %v352 = vunpack.c.l.b16 %v180
      %v353 = vunpack.c.h.b16 %v180
      %v354 = vunpack.c.l.b16 %v181
      %v355 = vunpack.c.h.b16 %v181
      %v356 = vunpack.c.l.b16 %v182
      %v357 = vunpack.c.h.b16 %v182
      %v358 = vunpack.c.l.b16 %v183
      %v359 = vunpack.c.h.b16 %v183
      %v360 = vunpack.c.l.b16 %v184
      %v361 = vunpack.c.h.b16 %v184
      %v362 = vunpack.c.l.b16 %v185
      %v363 = vunpack.c.h.b16 %v185
      %v364 = vunpack.c.l.b16 %v186
      %v365 = vunpack.c.h.b16 %v186
      %v366 = vunpack.c.l.b16 %v187
      %v367 = vunpack.c.h.b16 %v187
      %v368 = vunpack.c.l.b16 %v188
      %v369 = vunpack.c.h.b16 %v188
      %v370 = vunpack.c.l.b16 %v189
      %v371 = vunpack.c.h.b16 %v189
      %v372 = vunpack.c.l.b16 %v190
      %v373 = vunpack.c.h.b16 %v190
      %v374 = vunpack.c.l.b16 %v191
      %v375 = vunpack.c.h.b16 %v191
      %v376 = vunpack.c.l.b16 %v192
      %v377 = vunpack.c.h.b16 %v192
      %v378 = vunpack.c.l.b16 %v193
      %v379 = vunpack.c.h.b16 %v193
      %v380 = vpack.c.b16 %v350, %v348
      %v381 = vpack.c.b16 %v351, %v349
      %v382 = vpack.c.b16 %v354, %v352
      %v383 = vpack.c.b16 %v355, %v353
      %v384 = vpack.c.b16 %v358, %v356
      %v385 = vpack.c.b16 %v359, %v357
      %v386 = vpack.c.b16 %v362, %v360
      %v387 = vpack.c.b16 %v363, %v361
      %v388 = vpack.c.b16 %v366, %v364
      %v389 = vpack.c.b16 %v367, %v365
      %v390 = vpack.c.b16 %v370, %v368
      %v391 = vpack.c.b16 %v371, %v369
      %v392 = vpack.c.b16 %v374, %v372
      %v393 = vpack.c.b16 %v375, %v373
      %v394 = vpack.c.b16 %v378, %v376
      %v395 = vpack.c.b16 %v379, %v377
      %v444 = vunpack.c.l.b16 %v194
      %v445 = vunpack.c.l.b16 %v195
      %v446 = vunpack.c.l.b16 %v196
      %v447 = vunpack.c.l.b16 %v197
      %v448 = vunpack.c.l.b16 %v198
      %v449 = vunpack.c.l.b16 %v199
      %v450 = vunpack.c.l.b16 %v200
      %v451 = vunpack.c.l.b16 %v201
      %v452 = vunpack.c.l.b16 %v202
      %v453 = vunpack.c.l.b16 %v203
      %v454 = vunpack.c.l.b16 %v204
      %v455 = vunpack.c.l.b16 %v205
      %v456 = vunpack.c.l.b16 %v206
      %v457 = vunpack.c.l.b16 %v207
      %v458 = vunpack.c.l.b16 %v208
      %v459 = vunpack.c.l.b16 %v209
      %v460 = vunpack.c.l.b16 %v210
      %v461 = vunpack.c.l.b16 %v211
      %v462 = vunpack.c.l.b16 %v212
      %v463 = vunpack.c.l.b16 %v213
      %v464 = vunpack.c.l.b16 %v214
      %v465 = vunpack.c.l.b16 %v215
      %v466 = vunpack.c.l.b16 %v216
      %v467 = vunpack.c.l.b16 %v217
      %v468 = vunpack.c.l.b16 %v218
      %v469 = vunpack.c.l.b16 %v219
      %v470 = vunpack.c.l.b16 %v220
      %v471 = vunpack.c.l.b16 %v221
      %v472 = vunpack.c.l.b16 %v222
      %v473 = vunpack.c.l.b16 %v223
      %v474 = vunpack.c.l.b16 %v224
      %v475 = vunpack.c.l.b16 %v225
      %v476 = vpack.c.b16 %v445, %v444
      %v477 = vpack.c.b16 %v447, %v446
      %v478 = vpack.c.b16 %v449, %v448
      %v479 = vpack.c.b16 %v451, %v450
      %v480 = vpack.c.b16 %v453, %v452
      %v481 = vpack.c.b16 %v455, %v454
      %v482 = vpack.c.b16 %v457, %v456
      %v483 = vpack.c.b16 %v459, %v458
      %v484 = vpack.c.b16 %v461, %v460
      %v485 = vpack.c.b16 %v463, %v462
      %v486 = vpack.c.b16 %v465, %v464
      %v487 = vpack.c.b16 %v467, %v466
      %v488 = vpack.c.b16 %v469, %v468
      %v489 = vpack.c.b16 %v471, %v470
      %v490 = vpack.c.b16 %v473, %v472
      %v491 = vpack.c.b16 %v475, %v474
      %508 = vmatprep.subr.bf16.mxu0 0
      %509 = vmatpush1.bf16.msra.mxu0 %v476
      %510 = vmatprep.subr.bf16.mxu0 0
      %511 = vmatpush1.bf16.msra.mxu0 %v477
      %512 = vmatprep.subr.bf16.mxu0 0
      %513 = vmatpush1.bf16.msra.mxu0 %v478
      %514 = vmatprep.subr.bf16.mxu0 0
      %515 = vmatpush1.bf16.msra.mxu0 %v479
      %516 = vmatprep.subr.bf16.mxu0 0
      %517 = vmatpush1.bf16.msra.mxu0 %v480
      %518 = vmatprep.subr.bf16.mxu0 0
      %519 = vmatpush1.bf16.msra.mxu0 %v481
      %520 = vmatprep.subr.bf16.mxu0 0
      %521 = vmatpush1.bf16.msra.mxu0 %v482
      %522 = vmatprep.subr.bf16.mxu0 0
      %523 = vmatpush1.bf16.msra.mxu0 %v483
      %524 = vmatprep.subr.bf16.mxu0 0
      %525 = vmatpush1.bf16.msra.mxu0 %v484
      %526 = vmatprep.subr.bf16.mxu0 0
      %527 = vmatpush1.bf16.msra.mxu0 %v485
      %528 = vmatprep.subr.bf16.mxu0 0
      %529 = vmatpush1.bf16.msra.mxu0 %v486
      %530 = vmatprep.subr.bf16.mxu0 0
      %531 = vmatpush1.bf16.msra.mxu0 %v487
      %532 = vmatprep.subr.bf16.mxu0 0
      %533 = vmatpush1.bf16.msra.mxu0 %v488
      %534 = vmatprep.subr.bf16.mxu0 0
      %535 = vmatpush1.bf16.msra.mxu0 %v489
      %536 = vmatprep.subr.bf16.mxu0 0
      %537 = vmatpush1.bf16.msra.mxu0 %v490
      %538 = vmatprep.subr.bf16.mxu0 0
      %539 = vmatpush1.bf16.msra.mxu0 %v491
      %540 = vmatprep.mubr.bf16.mxu0 %v381
      %541 = vmatmul.mubr.bf16.gmra.mrb[0].mxu0 %v380
      %v542 = vpop.f32.mrb[0].mxu0
      %v543 = vadd.f32 %v316, %v542
      %v544 = vpop.f32.mrb[0].mxu0
      %v545 = vpop.f32.mrb[0].mxu0
      %v546 = vadd.f32 %v317, %v545
      %v547 = vpop.f32.mrb[0].mxu0
      %548 = vmatprep.mubr.bf16.mxu0 %v383
      %549 = vmatmul.mubr.bf16.gmra.mrb[0].mxu0 %v382
      %v550 = vpop.f32.mrb[0].mxu0
      %v551 = vadd.f32 %v318, %v550
      %v552 = vpop.f32.mrb[0].mxu0
      %v553 = vpop.f32.mrb[0].mxu0
      %v554 = vadd.f32 %v319, %v553
      %v555 = vpop.f32.mrb[0].mxu0
      %556 = vmatprep.mubr.bf16.mxu0 %v385
      %557 = vmatmul.mubr.bf16.gmra.mrb[0].mxu0 %v384
      %v558 = vpop.f32.mrb[0].mxu0
      %v559 = vadd.f32 %v320, %v558
      %v560 = vpop.f32.mrb[0].mxu0
      %v561 = vpop.f32.mrb[0].mxu0
      %v562 = vadd.f32 %v321, %v561
      %v563 = vpop.f32.mrb[0].mxu0
      %564 = vmatprep.mubr.bf16.mxu0 %v387
      %565 = vmatmul.mubr.bf16.gmra.mrb[0].mxu0 %v386
      %v566 = vpop.f32.mrb[0].mxu0
      %v567 = vadd.f32 %v322, %v566
      %v568 = vpop.f32.mrb[0].mxu0
      %v569 = vpop.f32.mrb[0].mxu0
      %v570 = vadd.f32 %v323, %v569
      %v571 = vpop.f32.mrb[0].mxu0
      %572 = vmatprep.mubr.bf16.mxu0 %v389
      %573 = vmatmul.mubr.bf16.gmra.mrb[0].mxu0 %v388
      %v574 = vpop.f32.mrb[0].mxu0
      %v575 = vadd.f32 %v324, %v574
      %v576 = vpop.f32.mrb[0].mxu0
      %v577 = vpop.f32.mrb[0].mxu0
      %v578 = vadd.f32 %v325, %v577
      %v579 = vpop.f32.mrb[0].mxu0
      %580 = vmatprep.mubr.bf16.mxu0 %v391
      %581 = vmatmul.mubr.bf16.gmra.mrb[0].mxu0 %v390
      %v582 = vpop.f32.mrb[0].mxu0
      %v583 = vadd.f32 %v326, %v582
      %v584 = vpop.f32.mrb[0].mxu0
      %v585 = vpop.f32.mrb[0].mxu0
      %v586 = vadd.f32 %v327, %v585
      %v587 = vpop.f32.mrb[0].mxu0
      %588 = vmatprep.mubr.bf16.mxu0 %v393
      %589 = vmatmul.mubr.bf16.gmra.mrb[0].mxu0 %v392
      %v590 = vpop.f32.mrb[0].mxu0
      %v591 = vadd.f32 %v328, %v590
      %v592 = vpop.f32.mrb[0].mxu0
      %v593 = vpop.f32.mrb[0].mxu0
      %v594 = vadd.f32 %v329, %v593
      %v595 = vpop.f32.mrb[0].mxu0
      %596 = vmatprep.mubr.bf16.mxu0 %v395
      %597 = vmatmul.mubr.bf16.gmra.mrb[0].mxu0 %v394
      %v598 = vpop.f32.mrb[0].mxu0
      %v599 = vadd.f32 %v330, %v598
      %v600 = vpop.f32.mrb[0].mxu0
      %v601 = vpop.f32.mrb[0].mxu0
      %v602 = vadd.f32 %v331, %v601
      %v603 = vpop.f32.mrb[0].mxu0
      %604 = vdwg.mxu0
      %v605 = vmax.f32 %v543, 0.0
      %v606 = vmax.f32 %v546, 0.0
      %v607 = vmax.f32 %v551, 0.0
      %v608 = vmax.f32 %v554, 0.0
      %v609 = vmax.f32 %v559, 0.0
      %v610 = vmax.f32 %v562, 0.0
      %v611 = vmax.f32 %v567, 0.0
      %v612 = vmax.f32 %v570, 0.0
      %v613 = vmax.f32 %v575, 0.0
      %v614 = vmax.f32 %v578, 0.0
      %v615 = vmax.f32 %v583, 0.0
      %v616 = vmax.f32 %v586, 0.0
      %v617 = vmax.f32 %v591, 0.0
      %v618 = vmax.f32 %v594, 0.0
      %v619 = vmax.f32 %v599, 0.0
      %v620 = vmax.f32 %v602, 0.0
      %v621 = vpack.c.bf16 %v606, %v605
      %v622 = vpack.c.bf16 %v608, %v607
      %v623 = vpack.c.bf16 %v610, %v609
      %v624 = vpack.c.bf16 %v612, %v611
      %v625 = vpack.c.bf16 %v614, %v613
      %v626 = vpack.c.bf16 %v616, %v615
      %v627 = vpack.c.bf16 %v618, %v617
      %v628 = vpack.c.bf16 %v620, %v619
      %v637 = vunpack.c.l.b16 %v621
      %v638 = vunpack.c.h.b16 %v621
      %v639 = vunpack.c.l.b16 %v622
      %v640 = vunpack.c.h.b16 %v622
      %v641 = vunpack.c.l.b16 %v623
      %v642 = vunpack.c.h.b16 %v623
      %v643 = vunpack.c.l.b16 %v624
      %v644 = vunpack.c.h.b16 %v624
      %v645 = vunpack.c.l.b16 %v625
      %v646 = vunpack.c.h.b16 %v625
      %v647 = vunpack.c.l.b16 %v626
      %v648 = vunpack.c.h.b16 %v626
      %v649 = vunpack.c.l.b16 %v627
      %v650 = vunpack.c.h.b16 %v627
      %v651 = vunpack.c.l.b16 %v628
      %v652 = vunpack.c.h.b16 %v628
      %v653 = vpack.c.b16 %v637, %v637
      %v654 = vpack.c.b16 %v638, %v638
      %v655 = vpack.c.b16 %v639, %v639
      %v656 = vpack.c.b16 %v640, %v640
      %v657 = vpack.c.b16 %v641, %v641
      %v658 = vpack.c.b16 %v642, %v642
      %v659 = vpack.c.b16 %v643, %v643
      %v660 = vpack.c.b16 %v644, %v644
      %v661 = vpack.c.b16 %v645, %v645
      %v662 = vpack.c.b16 %v646, %v646
      %v663 = vpack.c.b16 %v647, %v647
      %v664 = vpack.c.b16 %v648, %v648
      %v665 = vpack.c.b16 %v649, %v649
      %v666 = vpack.c.b16 %v650, %v650
      %v667 = vpack.c.b16 %v651, %v651
      %v668 = vpack.c.b16 %v652, %v652
      %685 = vst [vmem:[%s175] sm:$0xf] %v653
      %686 = vst [vmem:[%s175 + $0x4] sm:$0xf] %v654
      %687 = vst [vmem:[%s175 + $0x8] sm:$0xf] %v655
      %688 = vst [vmem:[%s175 + $0xc] sm:$0xf] %v656
      %689 = vst [vmem:[%s175 + $0x10] sm:$0xf] %v657
      %690 = vst [vmem:[%s175 + $0x14] sm:$0xf] %v658
      %691 = vst [vmem:[%s175 + $0x18] sm:$0xf] %v659
      %692 = vst [vmem:[%s175 + $0x1c] sm:$0xf] %v660
      %693 = vst [vmem:[%s175 + $0x20] sm:$0xf] %v661
      %694 = vst [vmem:[%s175 + $0x24] sm:$0xf] %v662
      %695 = vst [vmem:[%s175 + $0x28] sm:$0xf] %v663
      %696 = vst [vmem:[%s175 + $0x2c] sm:$0xf] %v664
      %697 = vst [vmem:[%s175 + $0x30] sm:$0xf] %v665
      %698 = vst [vmem:[%s175 + $0x34] sm:$0xf] %v666
      %699 = vst [vmem:[%s175 + $0x38] sm:$0xf] %v667
      %700 = vst [vmem:[%s175 + $0x3c] sm:$0xf] %v668
      %s701 = smul.u32 16, %s14
      %p702 = scmp.lt.s32.totalorder %s701, 31
      %s703 = scalar_select %p702, %s701, 31
      %s704 = smul.addr %s703, 4
      %s705 = scalar_lea.vmem %s3, %s704
      // Predicated region
      $region33: #{gcn_forward.5} parent=31 // pred_check
        %p706 = pneg %p100
      $region34: #{gcn_forward.5} parent=31 // pred_check_branch
        %708 = sbr.rel (%p706) target = $region36
      $region35: #{gcn_forward.5} parent=31 // pred_region
        %s709 = smul.u32 16, %s14
      $region36: #{gcn_forward.5} parent=31 // pred_fallthru
        _
    $region32: #{gcn_forward.5} parent=5 // pred_fallthru
      _
    %p710 = scmp.le.s32.totalorder 2, %s9
    // Predicated region
    $region37: #{gcn_forward.5} parent=5 // pred_check
      %p711 = pneg %p710
    $region38: #{gcn_forward.5} parent=5 // pred_check_branch
      %713 = sbr.rel (%p711) target = $region40
    $region39: #{gcn_forward.5} parent=5 // pred_region
      %s714 = ssub.s32 %s9, 2
      // Predicated region
      $region41: #{gcn_forward.5} parent=39 // pred_check
        %p715 = pneg %p106
      $region42: #{gcn_forward.5} parent=39 // pred_check_branch
        %717 = sbr.rel (%p715) target = $region44
      $region43: #{gcn_forward.5} parent=39 // pred_region
        %s718 = smul.u32 16, %s15
        %p719 = scmp.lt.s32.totalorder %s718, 31
        %s720 = scalar_select %p719, %s718, 31
        %s721 = smul.addr %s720, 4
        %s722 = scalar_lea.vmem %s3, %s721
      $region44: #{gcn_forward.5} parent=39 // pred_fallthru
        _
    $region40: #{gcn_forward.5} parent=5 // pred_fallthru
      _
  $region6: #{gcn_forward.5} parent=0 // loop_footer
    %s13 = sadd.s32 1, %s9
  $region7: #{gcn_forward.5} parent=0 // loop_footer_branch
    %8 = sbr.rel target = $region3
  $region8: #{gcn_forward.5} parent=0 // loop_exit
    _

</llo_original>
